<compile_context>
chip_gen: v7x
topology: tpu7x:2x2x1
jax: 0.10.0
libtpu: 0.0.40
codegen_flags: <defaults>
</compile_context>

<pallas_src>
import jax
import jax.numpy as jnp
from jax.experimental import pallas as pl
from jax.experimental.pallas import tpu as pltpu


def _make_label_diff_l1_kernel(tm, tn, d_dim, sm, sn, compute_dtype):
    """Kernel over one (tm, tn) output tile, processed in (sm, sn) strips."""

    def kernel(a_ref, bt_ref, o_ref):
        # a_ref : (tm, D)   row tile of labels
        # bt_ref: (D, tn)   column tile of labels.T  (lane-dense along tn)
        # o_ref : (tm, tn)  output tile of the pairwise L1 distance matrix
        for r0 in range(0, tm, sm):
            a_strip = a_ref[pl.ds(r0, sm), :].astype(compute_dtype)      # (sm, D)
            for c0 in range(0, tn, sn):
                b_strip = bt_ref[:, pl.ds(c0, sn)].astype(compute_dtype)  # (D, sn)
                # f32 accumulator stays register-resident (<= ~32 vregs).
                acc = jnp.abs(a_strip[:, 0:1] - b_strip[0:1, :]).astype(jnp.float32)
                for d in range(1, d_dim):
                    diff = jnp.abs(a_strip[:, d:d + 1] - b_strip[d:d + 1, :])
                    acc = acc + diff.astype(jnp.float32)
                # Single lane-dense store per strip (starts are static multiples
                # of the strip sizes, so no masked partial stores).
                o_ref[pl.ds(r0, sm), pl.ds(c0, sn)] = acc.astype(o_ref.dtype)

    return kernel


def _round_up(x, m):
    return ((x + m - 1) // m) * m


def _pick_tile(n, want, align):
    """Largest multiple of `align` that divides n and is <= want; else full extent."""
    t = (min(want, n) // align) * align
    while t >= align:
        if n % t == 0:
            return t
        t -= align
    return n  # full-extent block is always legal (only hit if n % align != 0)


def label_difference_l1(labels, *, tm=512, tn=1024, out_dtype=None, compute_dtype=None):
    """Pairwise L1 distance matrix, equivalent to
    torch.abs(labels[:, None, :] - labels[None, :, :]).sum(dim=-1)."""
    N, D = labels.shape
    out_dtype = labels.dtype if out_dtype is None else out_dtype
    if compute_dtype is None:
        # Keep subtract/abs packed when labels are bf16 (v6e/v7x VALU does 2x
        # throughput on packed bf16); accumulation is always f32 for precision.
        compute_dtype = jnp.bfloat16 if labels.dtype == jnp.bfloat16 else jnp.float32

    # Sublane alignment: 8 for 32-bit outputs, 16 for 16-bit (packed) outputs.
    row_align = 8 if jnp.dtype(out_dtype).itemsize >= 4 else 16

    # Pad rows to a sublane multiple and columns to a lane (128) multiple so the
    # output path is always unmasked, lane-dense stores (never full-extent blocks).
    n_rows = _round_up(N, row_align)
    n_cols = _round_up(N, 128)

    labels_rows = labels
    if n_rows != N:
        labels_rows = jnp.pad(labels, ((0, n_rows - N), (0, 0)))
    labels_t = labels.T                                   # (D, N) lane-dense operand
    if n_cols != N:
        labels_t = jnp.pad(labels_t, ((0, 0), (0, n_cols - N)))

    tm = _pick_tile(n_rows, tm, row_align)
    tn = _pick_tile(n_cols, tn, 128)

    # Make sure the grid has >= 2 blocks so both v7x TensorCores get work on
    # small/medium N (no-op perf-wise on single-TC v5e/v6e).
    if n_rows // tm == 1 and n_cols // tn == 1:
        half = (n_rows // 2 // row_align) * row_align
        if half >= row_align:
            tm = _pick_tile(n_rows, half, row_align)

    # In-kernel strip sizes: f32 accumulator capped at ~32 vregs (32 * 1024 elems).
    sn = _pick_tile(tn, 512, 128)
    sm = _pick_tile(tm, max(row_align, (32 * 1024) // sn), row_align)

    kernel = _make_label_diff_l1_kernel(tm, tn, D, sm, sn, compute_dtype)

    out_itemsize = jnp.dtype(out_dtype).itemsize
    in_itemsize = jnp.dtype(labels.dtype).itemsize
    cost = pl.CostEstimate(
        flops=3 * n_rows * n_cols * D,          # sub + abs + add per (i, j, d)
        transcendentals=0,
        bytes_accessed=n_rows * n_cols * out_itemsize
        + (n_rows + n_cols) * D * in_itemsize,
    )

    out = pl.pallas_call(
        kernel,
        out_shape=jax.ShapeDtypeStruct((n_rows, n_cols), out_dtype),
        grid=(n_rows // tm, n_cols // tn),
        in_specs=[
            pl.BlockSpec((tm, D), lambda i, j: (i, 0)),   # row tile of labels
            pl.BlockSpec((D, tn), lambda i, j: (0, j)),   # column tile of labels.T
        ],
        out_specs=pl.BlockSpec((tm, tn), lambda i, j: (i, j)),
        compiler_params=pltpu.CompilerParams(
            dimension_semantics=("parallel", "parallel"),
        ),
        cost_estimate=cost,
    )(labels_rows, labels_t)

    if n_rows != N or n_cols != N:
        out = out[:N, :N]
    return out


if __name__ == "__main__":
    key = jax.random.PRNGKey(0)
    N, D = 256, 16  # small shapes: 256 samples, 16-dim labels
    labels = jax.random.normal(key, (N, D), dtype=jnp.float32)

    # Pure-JAX reference.
    ref = jnp.abs(labels[:, None, :] - labels[None, :, :]).sum(axis=-1)

    # 1) Default tiles (grid is split so >= 2 blocks even at this small N).
    out = jax.block_until_ready(label_difference_l1(labels))
    assert out.shape == (N, N)
    assert jnp.allclose(out, ref, atol=1e-5, rtol=1e-5), "mismatch vs reference (default tiles)"

    # 2) Explicit smaller tiles to exercise the full 2-D grid path.
    out2 = jax.block_until_ready(label_difference_l1(labels, tm=128, tn=128))
    assert jnp.allclose(out2, ref, atol=1e-5, rtol=1e-5), "mismatch vs reference (tiled grid)"

    # 3) Awkward N (not a multiple of 128) exercises the padding path.
    N2, D2 = 200, 3
    labels2 = jax.random.normal(jax.random.PRNGKey(0), (N2, D2), dtype=jnp.float32)
    ref2 = jnp.abs(labels2[:, None, :] - labels2[None, :, :]).sum(axis=-1)
    out3 = jax.block_until_ready(label_difference_l1(labels2))
    assert out3.shape == (N2, N2)
    assert jnp.allclose(out3, ref2, atol=1e-5, rtol=1e-5), "mismatch vs reference (padded N)"

    print("KERNEL_OK")
</pallas_src>

<mosaic_0001>
module attributes {stable_mosaic.version = 11 : i64} {
  func.func @kernel(%arg0: i32, %arg1: i32, %arg2: memref<128x16xf32, #tpu.memory_space<vmem>>, %arg3: memref<16x256xf32, #tpu.memory_space<vmem>>, %arg4: memref<128x256xf32, #tpu.memory_space<vmem>>) attributes {dimension_semantics = [#tpu.dimension_semantics<parallel>, #tpu.dimension_semantics<parallel>], iteration_bounds = array<i64: 2, 1>, scalar_prefetch = 0 : i64, scratch_operands = 0 : i64, tpu.core_type = #tpu.core_type<tc>, window_params = [{transform_indices = @transform_0, window_bounds = array<i64: 128, 16>}, {transform_indices = @transform_1, window_bounds = array<i64: 16, 256>}, {transform_indices = @transform_2, window_bounds = array<i64: 128, 256>}]} {
    %c0 = arith.constant 0 : index
    %c0_0 = arith.constant 0 : index
    %0 = vector.load %arg2[%c0, %c0_0] : memref<128x16xf32, #tpu.memory_space<vmem>>, vector<128x16xf32>
    %c0_1 = arith.constant 0 : index
    %c0_2 = arith.constant 0 : index
    %1 = vector.load %arg3[%c0_1, %c0_2] : memref<16x256xf32, #tpu.memory_space<vmem>>, vector<16x256xf32>
    %2 = vector.extract_strided_slice %0 {offsets = [0, 0], sizes = [128, 1], strides = [1, 1]} : vector<128x16xf32> to vector<128x1xf32>
    %3 = vector.extract_strided_slice %1 {offsets = [0, 0], sizes = [1, 256], strides = [1, 1]} : vector<16x256xf32> to vector<1x256xf32>
    %4 = vector.broadcast %2 : vector<128x1xf32> to vector<128x256xf32>
    %5 = vector.broadcast %3 : vector<1x256xf32> to vector<128x256xf32>
    %6 = arith.subf %4, %5 : vector<128x256xf32>
    %7 = math.absf %6 : vector<128x256xf32>
    %8 = vector.extract_strided_slice %0 {offsets = [0, 1], sizes = [128, 1], strides = [1, 1]} : vector<128x16xf32> to vector<128x1xf32>
    %9 = vector.extract_strided_slice %1 {offsets = [1, 0], sizes = [1, 256], strides = [1, 1]} : vector<16x256xf32> to vector<1x256xf32>
    %10 = vector.broadcast %8 : vector<128x1xf32> to vector<128x256xf32>
    %11 = vector.broadcast %9 : vector<1x256xf32> to vector<128x256xf32>
    %12 = arith.subf %10, %11 : vector<128x256xf32>
    %13 = math.absf %12 : vector<128x256xf32>
    %14 = arith.addf %7, %13 : vector<128x256xf32>
    %15 = vector.extract_strided_slice %0 {offsets = [0, 2], sizes = [128, 1], strides = [1, 1]} : vector<128x16xf32> to vector<128x1xf32>
    %16 = vector.extract_strided_slice %1 {offsets = [2, 0], sizes = [1, 256], strides = [1, 1]} : vector<16x256xf32> to vector<1x256xf32>
    %17 = vector.broadcast %15 : vector<128x1xf32> to vector<128x256xf32>
    %18 = vector.broadcast %16 : vector<1x256xf32> to vector<128x256xf32>
    %19 = arith.subf %17, %18 : vector<128x256xf32>
    %20 = math.absf %19 : vector<128x256xf32>
    %21 = arith.addf %14, %20 : vector<128x256xf32>
    %22 = vector.extract_strided_slice %0 {offsets = [0, 3], sizes = [128, 1], strides = [1, 1]} : vector<128x16xf32> to vector<128x1xf32>
    %23 = vector.extract_strided_slice %1 {offsets = [3, 0], sizes = [1, 256], strides = [1, 1]} : vector<16x256xf32> to vector<1x256xf32>
    %24 = vector.broadcast %22 : vector<128x1xf32> to vector<128x256xf32>
    %25 = vector.broadcast %23 : vector<1x256xf32> to vector<128x256xf32>
    %26 = arith.subf %24, %25 : vector<128x256xf32>
    %27 = math.absf %26 : vector<128x256xf32>
    %28 = arith.addf %21, %27 : vector<128x256xf32>
    %29 = vector.extract_strided_slice %0 {offsets = [0, 4], sizes = [128, 1], strides = [1, 1]} : vector<128x16xf32> to vector<128x1xf32>
    %30 = vector.extract_strided_slice %1 {offsets = [4, 0], sizes = [1, 256], strides = [1, 1]} : vector<16x256xf32> to vector<1x256xf32>
    %31 = vector.broadcast %29 : vector<128x1xf32> to vector<128x256xf32>
    %32 = vector.broadcast %30 : vector<1x256xf32> to vector<128x256xf32>
    %33 = arith.subf %31, %32 : vector<128x256xf32>
    %34 = math.absf %33 : vector<128x256xf32>
    %35 = arith.addf %28, %34 : vector<128x256xf32>
    %36 = vector.extract_strided_slice %0 {offsets = [0, 5], sizes = [128, 1], strides = [1, 1]} : vector<128x16xf32> to vector<128x1xf32>
    %37 = vector.extract_strided_slice %1 {offsets = [5, 0], sizes = [1, 256], strides = [1, 1]} : vector<16x256xf32> to vector<1x256xf32>
    %38 = vector.broadcast %36 : vector<128x1xf32> to vector<128x256xf32>
    %39 = vector.broadcast %37 : vector<1x256xf32> to vector<128x256xf32>
    %40 = arith.subf %38, %39 : vector<128x256xf32>
    %41 = math.absf %40 : vector<128x256xf32>
    %42 = arith.addf %35, %41 : vector<128x256xf32>
    %43 = vector.extract_strided_slice %0 {offsets = [0, 6], sizes = [128, 1], strides = [1, 1]} : vector<128x16xf32> to vector<128x1xf32>
    %44 = vector.extract_strided_slice %1 {offsets = [6, 0], sizes = [1, 256], strides = [1, 1]} : vector<16x256xf32> to vector<1x256xf32>
    %45 = vector.broadcast %43 : vector<128x1xf32> to vector<128x256xf32>
    %46 = vector.broadcast %44 : vector<1x256xf32> to vector<128x256xf32>
    %47 = arith.subf %45, %46 : vector<128x256xf32>
    %48 = math.absf %47 : vector<128x256xf32>
    %49 = arith.addf %42, %48 : vector<128x256xf32>
    %50 = vector.extract_strided_slice %0 {offsets = [0, 7], sizes = [128, 1], strides = [1, 1]} : vector<128x16xf32> to vector<128x1xf32>
    %51 = vector.extract_strided_slice %1 {offsets = [7, 0], sizes = [1, 256], strides = [1, 1]} : vector<16x256xf32> to vector<1x256xf32>
    %52 = vector.broadcast %50 : vector<128x1xf32> to vector<128x256xf32>
    %53 = vector.broadcast %51 : vector<1x256xf32> to vector<128x256xf32>
    %54 = arith.subf %52, %53 : vector<128x256xf32>
    %55 = math.absf %54 : vector<128x256xf32>
    %56 = arith.addf %49, %55 : vector<128x256xf32>
    %57 = vector.extract_strided_slice %0 {offsets = [0, 8], sizes = [128, 1], strides = [1, 1]} : vector<128x16xf32> to vector<128x1xf32>
    %58 = vector.extract_strided_slice %1 {offsets = [8, 0], sizes = [1, 256], strides = [1, 1]} : vector<16x256xf32> to vector<1x256xf32>
    %59 = vector.broadcast %57 : vector<128x1xf32> to vector<128x256xf32>
    %60 = vector.broadcast %58 : vector<1x256xf32> to vector<128x256xf32>
    %61 = arith.subf %59, %60 : vector<128x256xf32>
    %62 = math.absf %61 : vector<128x256xf32>
    %63 = arith.addf %56, %62 : vector<128x256xf32>
    %64 = vector.extract_strided_slice %0 {offsets = [0, 9], sizes = [128, 1], strides = [1, 1]} : vector<128x16xf32> to vector<128x1xf32>
    %65 = vector.extract_strided_slice %1 {offsets = [9, 0], sizes = [1, 256], strides = [1, 1]} : vector<16x256xf32> to vector<1x256xf32>
    %66 = vector.broadcast %64 : vector<128x1xf32> to vector<128x256xf32>
    %67 = vector.broadcast %65 : vector<1x256xf32> to vector<128x256xf32>
    %68 = arith.subf %66, %67 : vector<128x256xf32>
    %69 = math.absf %68 : vector<128x256xf32>
    %70 = arith.addf %63, %69 : vector<128x256xf32>
    %71 = vector.extract_strided_slice %0 {offsets = [0, 10], sizes = [128, 1], strides = [1, 1]} : vector<128x16xf32> to vector<128x1xf32>
    %72 = vector.extract_strided_slice %1 {offsets = [10, 0], sizes = [1, 256], strides = [1, 1]} : vector<16x256xf32> to vector<1x256xf32>
    %73 = vector.broadcast %71 : vector<128x1xf32> to vector<128x256xf32>
    %74 = vector.broadcast %72 : vector<1x256xf32> to vector<128x256xf32>
    %75 = arith.subf %73, %74 : vector<128x256xf32>
    %76 = math.absf %75 : vector<128x256xf32>
    %77 = arith.addf %70, %76 : vector<128x256xf32>
    %78 = vector.extract_strided_slice %0 {offsets = [0, 11], sizes = [128, 1], strides = [1, 1]} : vector<128x16xf32> to vector<128x1xf32>
    %79 = vector.extract_strided_slice %1 {offsets = [11, 0], sizes = [1, 256], strides = [1, 1]} : vector<16x256xf32> to vector<1x256xf32>
    %80 = vector.broadcast %78 : vector<128x1xf32> to vector<128x256xf32>
    %81 = vector.broadcast %79 : vector<1x256xf32> to vector<128x256xf32>
    %82 = arith.subf %80, %81 : vector<128x256xf32>
    %83 = math.absf %82 : vector<128x256xf32>
    %84 = arith.addf %77, %83 : vector<128x256xf32>
    %85 = vector.extract_strided_slice %0 {offsets = [0, 12], sizes = [128, 1], strides = [1, 1]} : vector<128x16xf32> to vector<128x1xf32>
    %86 = vector.extract_strided_slice %1 {offsets = [12, 0], sizes = [1, 256], strides = [1, 1]} : vector<16x256xf32> to vector<1x256xf32>
    %87 = vector.broadcast %85 : vector<128x1xf32> to vector<128x256xf32>
    %88 = vector.broadcast %86 : vector<1x256xf32> to vector<128x256xf32>
    %89 = arith.subf %87, %88 : vector<128x256xf32>
    %90 = math.absf %89 : vector<128x256xf32>
    %91 = arith.addf %84, %90 : vector<128x256xf32>
    %92 = vector.extract_strided_slice %0 {offsets = [0, 13], sizes = [128, 1], strides = [1, 1]} : vector<128x16xf32> to vector<128x1xf32>
    %93 = vector.extract_strided_slice %1 {offsets = [13, 0], sizes = [1, 256], strides = [1, 1]} : vector<16x256xf32> to vector<1x256xf32>
    %94 = vector.broadcast %92 : vector<128x1xf32> to vector<128x256xf32>
    %95 = vector.broadcast %93 : vector<1x256xf32> to vector<128x256xf32>
    %96 = arith.subf %94, %95 : vector<128x256xf32>
    %97 = math.absf %96 : vector<128x256xf32>
    %98 = arith.addf %91, %97 : vector<128x256xf32>
    %99 = vector.extract_strided_slice %0 {offsets = [0, 14], sizes = [128, 1], strides = [1, 1]} : vector<128x16xf32> to vector<128x1xf32>
    %100 = vector.extract_strided_slice %1 {offsets = [14, 0], sizes = [1, 256], strides = [1, 1]} : vector<16x256xf32> to vector<1x256xf32>
    %101 = vector.broadcast %99 : vector<128x1xf32> to vector<128x256xf32>
    %102 = vector.broadcast %100 : vector<1x256xf32> to vector<128x256xf32>
    %103 = arith.subf %101, %102 : vector<128x256xf32>
    %104 = math.absf %103 : vector<128x256xf32>
    %105 = arith.addf %98, %104 : vector<128x256xf32>
    %106 = vector.extract_strided_slice %0 {offsets = [0, 15], sizes = [128, 1], strides = [1, 1]} : vector<128x16xf32> to vector<128x1xf32>
    %107 = vector.extract_strided_slice %1 {offsets = [15, 0], sizes = [1, 256], strides = [1, 1]} : vector<16x256xf32> to vector<1x256xf32>
    %108 = vector.broadcast %106 : vector<128x1xf32> to vector<128x256xf32>
    %109 = vector.broadcast %107 : vector<1x256xf32> to vector<128x256xf32>
    %110 = arith.subf %108, %109 : vector<128x256xf32>
    %111 = math.absf %110 : vector<128x256xf32>
    %112 = arith.addf %105, %111 : vector<128x256xf32>
    %c0_3 = arith.constant 0 : index
    %c0_4 = arith.constant 0 : index
    %113 = vector.load %arg4[%c0_3, %c0_4] : memref<128x256xf32, #tpu.memory_space<vmem>>, vector<128x256xf32>
    tpu.vector_store %arg4[%c0_3, %c0_4], %112 {strides = array<i32>} : memref<128x256xf32, #tpu.memory_space<vmem>>, vector<128x256xf32>,
    return
  }
  func.func @transform_0(%arg0: i32, %arg1: i32) -> (i32, i32) {
    %c0_i32 = arith.constant 0 : i32
    %c0_i32_0 = arith.constant 0 : i32
    return %arg0, %c0_i32 : i32, i32
  }
  func.func @transform_1(%arg0: i32, %arg1: i32) -> (i32, i32) {
    %c0_i32 = arith.constant 0 : i32
    %c0_i32_0 = arith.constant 0 : i32
    return %c0_i32, %arg1 : i32, i32
  }
  func.func @transform_2(%arg0: i32, %arg1: i32) -> (i32, i32) {
    %c0_i32 = arith.constant 0 : i32
    return %arg0, %arg1 : i32, i32
  }
}

</mosaic_0001>

<llo_original>
// kernel: tpu_custom_call.1
$region0: #{tpu_custom_call.1}
  #allocation0 [shape = 'u32[]', space=smem, size = 0x4, offset = 0x4, fixed_abs, tag = 'smem constant byte address 0x4 - core index']
  #allocation1 [shape = 'u32[144,128]{1,0:T(1,128)}', space=vmem, size = 0x12000, scoped, tag = 'internal scratch']
  %s0 = inlined_call_operand.vmem [shape: f32[256,16], index: 0, kind: input, shape index: {}]
  %s1 = inlined_call_operand.vmem [shape: f32[16,256], index: 1, kind: input, shape index: {}]
  %s2 = inlined_call_operand.hbm [shape: f32[256,256], index: 2, kind: output, shape index: {}]
  %s3 = sld [smem:[#allocation0]]
  $region41: #{tpu_custom_call.1} parent=0
    _
  %s5 = ssub.s32 1, %s3
  %s6 = scalar_select 0, %s5, %s3
  $region1: #{tpu_custom_call.1} parent=0
    #allocation2 [shape = 'u8[262144]{0}', space=vmem, size = 0x40000, scoped, tag = 'output window, operand 0']
    #allocation3 [shape = 's32[2]{0}', space=sflag, size = 0x8, scoped, tag = 'scoped memory for tpu_custom_call.1']
    %7 = vsyncpa [#allocation3], 0
    %s8 = scalar_lea.sflag [#allocation3], 1
    %9 = vsyncpa %s8, 0
    loop: start=0, step=1, limit=4
    $region2: #{tpu_custom_call.1} parent=1 // loop_pre_header
      _
    $region3: #{tpu_custom_call.1} parent=1 // loop_header
      %s11 = sphi 0, %s15
      %p12 = scmp.ge.s32.totalorder %s11, 4
      %s18 = sphi 0, %s30
      %s19 = sphi 0, %s26
      %s20 = sphi 0, %s18
      %s21 = sphi 0, %s19
      %s22 = sphi 0, %s20
      %s23 = sphi 0, %s21
      %s33 = sphi 0, %s35
      %s36 = sphi 0, %s33
      %s37 = sphi 0, %s36
      %s53 = sphi 0, %s37
      %s59 = sphi 0, %s61
      %s62 = sphi 0, %s59
      %s63 = sphi 0, %s62
      %s79 = sphi 0, %s63
      %s87 = sphi 0, %s89
      %s90 = sphi 0, %s87
      %s91 = sphi 0, %s90
      %s107 = sphi 0, %s91
    $region4: #{tpu_custom_call.1} parent=1 // loop_header_branch
      %14 = sbr.rel (%p12) target = $region8
    $region5: #{tpu_custom_call.1} parent=1 // loop_body
      %s16 = ssub.s32 %s11, 1
      %s17 = ssub.s32 %s11, 2
      %s24 = sadd.s32 1, %s19
      %p25 = scmp.ge.s32.totalorder %s24, 1
      %s26 = scalar_select %p25, 0, %s24
      %s27 = sadd.s32 1, %s18
      %s28 = scalar_select %p25, %s27, %s18
      %p29 = scmp.ge.s32.totalorder %s28, 2
      %s30 = scalar_select %p29, 0, %s28
      %s31 = ssub.s32 %s18, %s30
      %p32 = scmp.eq.s32.totalorder %s31, 0
      %s34 = sadd.s32 %s33, 1
      %s35 = scalar_select %p32, %s33, %s34
      %p38 = pneg %p32
      %p39 = scmp.eq.s32.totalorder %s11, 1
      %p40 = por %p38, %p39
      %p41 = scmp.ne.s32.totalorder %s33, %s36
      %p42 = scmp.eq.s32.totalorder %s11, 0
      %p43 = por %p41, %p42
      %p44 = scmp.ne.s32.totalorder %s33, %s36
      %p45 = scmp.eq.s32.totalorder %s16, 1
      %p46 = por %p44, %p45
      %p47 = scmp.ne.s32.totalorder %s36, %s37
      %p48 = scmp.eq.s32.totalorder %s16, 0
      %p49 = por %p47, %p48
      %p50 = scmp.ne.s32.totalorder %s36, %s37
      %p51 = scmp.eq.s32.totalorder %s17, 1
      %p52 = por %p50, %p51
      %p54 = scmp.ne.s32.totalorder %s37, %s53
      %p55 = scmp.eq.s32.totalorder %s17, 0
      %p56 = por %p54, %p55
      %s57 = ssub.s32 %s19, %s26
      %p58 = scmp.eq.s32.totalorder %s57, 0
      %s60 = sadd.s32 %s59, 1
      %s61 = scalar_select %p58, %s59, %s60
      %p64 = pneg %p58
      %p65 = scmp.eq.s32.totalorder %s11, 1
      %p66 = por %p64, %p65
      %p67 = scmp.ne.s32.totalorder %s59, %s62
      %p68 = scmp.eq.s32.totalorder %s11, 0
      %p69 = por %p67, %p68
      %p70 = scmp.ne.s32.totalorder %s59, %s62
      %p71 = scmp.eq.s32.totalorder %s16, 1
      %p72 = por %p70, %p71
      %p73 = scmp.ne.s32.totalorder %s62, %s63
      %p74 = scmp.eq.s32.totalorder %s16, 0
      %p75 = por %p73, %p74
      %p76 = scmp.ne.s32.totalorder %s62, %s63
      %p77 = scmp.eq.s32.totalorder %s17, 1
      %p78 = por %p76, %p77
      %p80 = scmp.ne.s32.totalorder %s63, %s79
      %p81 = scmp.eq.s32.totalorder %s17, 0
      %p82 = por %p80, %p81
      %s83 = ssub.s32 %s18, %s30
      %s84 = ssub.s32 %s19, %s26
      %s85 = sor.u32 %s83, %s84
      %p86 = scmp.eq.s32.totalorder %s85, 0
      %s88 = sadd.s32 %s87, 1
      %s89 = scalar_select %p86, %s87, %s88
      %p92 = pneg %p86
      %p93 = scmp.eq.s32.totalorder %s11, 1
      %p94 = por %p92, %p93
      %p95 = scmp.ne.s32.totalorder %s87, %s90
      %p96 = scmp.eq.s32.totalorder %s11, 0
      %p97 = por %p95, %p96
      %p98 = scmp.ne.s32.totalorder %s87, %s90
      %p99 = scmp.eq.s32.totalorder %s16, 1
      %p100 = por %p98, %p99
      %p101 = scmp.ne.s32.totalorder %s90, %s91
      %p102 = scmp.eq.s32.totalorder %s16, 0
      %p103 = por %p101, %p102
      %p104 = scmp.ne.s32.totalorder %s90, %s91
      %p105 = scmp.eq.s32.totalorder %s17, 1
      %p106 = por %p104, %p105
      %p108 = scmp.ne.s32.totalorder %s91, %s107
      %p109 = scmp.eq.s32.totalorder %s17, 0
      %p110 = por %p108, %p109
      %p111 = scmp.le.s32.totalorder 1, %s11
      %p112 = scmp.lt.s32.totalorder %s11, 3
      %p113 = pnand %p111, %p112
      %p114 = pneg %p113
      // Predicated region
      $region9: #{tpu_custom_call.1} parent=5 // pred_check
        _
      $region10: #{tpu_custom_call.1} parent=5 // pred_check_branch
        %116 = sbr.rel (%p113) target = $region12
      $region11: #{tpu_custom_call.1} parent=5 // pred_region
        %s117 = ssub.s32 %s11, 1
        // Predicated region
        $region13: #{tpu_custom_call.1} parent=11 // pred_check
          %p118 = pneg %p75
        $region14: #{tpu_custom_call.1} parent=11 // pred_check_branch
          %120 = sbr.rel (%p118) target = $region16
        $region15: #{tpu_custom_call.1} parent=11 // pred_region
          %s121 = smul.u32 2, %s21
          %p122 = scmp.lt.s32.totalorder %s121, 1
          %s123 = scalar_select %p122, %s121, 1
          %s124 = smul.addr %s123, 8
          %s125 = scalar_lea.vmem %s1, %s124
          %s126 = smul.u32 2, %s21
        $region16: #{tpu_custom_call.1} parent=11 // pred_fallthru
          _
      $region12: #{tpu_custom_call.1} parent=5 // pred_fallthru
        _
      %p127 = scmp.lt.s32.totalorder %s11, 2
      // Predicated region
      $region17: #{tpu_custom_call.1} parent=5 // pred_check
        %p128 = pneg %p127
      $region18: #{tpu_custom_call.1} parent=5 // pred_check_branch
        %130 = sbr.rel (%p128) target = $region20
      $region19: #{tpu_custom_call.1} parent=5 // pred_region
        // Predicated region
        $region21: #{tpu_custom_call.1} parent=19 // pred_check
          %p131 = pneg %p43
        $region22: #{tpu_custom_call.1} parent=19 // pred_check_branch
          %133 = sbr.rel (%p131) target = $region24
        $region23: #{tpu_custom_call.1} parent=19 // pred_region
          %s134 = smul.u32 16, %s18
          %p135 = scmp.lt.s32.totalorder %s134, 31
          %s136 = scalar_select %p135, %s134, 31
          %s137 = smul.addr %s136, 8
          %s138 = scalar_lea.vmem %s0, %s137
          %s139 = smul.u32 16, %s18
        $region24: #{tpu_custom_call.1} parent=19 // pred_fallthru
          _
      $region20: #{tpu_custom_call.1} parent=5 // pred_fallthru
        _
      %p140 = scmp.le.s32.totalorder 1, %s11
      %p141 = scmp.lt.s32.totalorder %s11, 3
      %p142 = pnand %p140, %p141
      %p143 = pneg %p142
      // Predicated region
      $region25: #{tpu_custom_call.1} parent=5 // pred_check
        _
      $region26: #{tpu_custom_call.1} parent=5 // pred_check_branch
        %145 = sbr.rel (%p142) target = $region28
      $region27: #{tpu_custom_call.1} parent=5 // pred_region
        %s146 = ssub.s32 %s11, 1
        %s147 = smul.u32 16, %s20
        %p148 = scmp.lt.s32.totalorder %s147, 31
        %s149 = scalar_select %p148, %s147, 31
        %s150 = smul.addr %s149, 8
        %s151 = scalar_lea.vmem %s0, %s150
        %p152 = pneg %p49
        %p153 = pneg %p46
        %s154 = smul.u32 2, %s21
        %p155 = scmp.lt.s32.totalorder %s154, 1
        %s156 = scalar_select %p155, %s154, 1
        %s157 = smul.addr %s156, 8
        %s158 = scalar_lea.vmem %s1, %s157
        %p159 = pneg %p75
        %p160 = pneg %p72
        %p161 = pneg %p103
        %p162 = pneg %p100
        %s163 = sand.u32 %s90, 1
        %s164 = scalar_lea.sflag [#allocation3], %s163
        %s165 = sand.u32 %s90, 1
        %s166 = smul.addr %s165, 256
        %s167 = scalar_lea.vmem [#allocation2], %s166
        %s168 = smul.u32 16, %s20
        %p169 = scmp.lt.s32.totalorder %s168, 31
        %s170 = scalar_select %p169, %s168, 31
        %s171 = smul.addr %s170, 8
        %s172 = scalar_lea.vmem %s0, %s171
        %s173 = smul.u32 16, %s20
        %s174 = smul.u32 2, %s21
        %p175 = scmp.lt.s32.totalorder %s174, 1
        %s176 = scalar_select %p175, %s174, 1
        %s177 = smul.addr %s176, 8
        %s178 = scalar_lea.vmem %s1, %s177
        %s179 = smul.u32 2, %s21
        %s180 = smul.u32 16, %s20
        %s181 = smul.u32 2, %s21
        %v182 = vld [vmem:[%s172] sm:$0xff]
        %v183 = vld [vmem:[%s172 + $0x8] sm:$0xff]
        %v184 = vld [vmem:[%s172 + $0x10] sm:$0xff]
        %v185 = vld [vmem:[%s172 + $0x18] sm:$0xff]
        %v186 = vld [vmem:[%s172 + $0x20] sm:$0xff]
        %v187 = vld [vmem:[%s172 + $0x28] sm:$0xff]
        %v188 = vld [vmem:[%s172 + $0x30] sm:$0xff]
        %v189 = vld [vmem:[%s172 + $0x38] sm:$0xff]
        %v190 = vld [vmem:[%s172 + $0x40] sm:$0xff]
        %v191 = vld [vmem:[%s172 + $0x48] sm:$0xff]
        %v192 = vld [vmem:[%s172 + $0x50] sm:$0xff]
        %v193 = vld [vmem:[%s172 + $0x58] sm:$0xff]
        %v194 = vld [vmem:[%s172 + $0x60] sm:$0xff]
        %v195 = vld [vmem:[%s172 + $0x68] sm:$0xff]
        %v196 = vld [vmem:[%s172 + $0x70] sm:$0xff]
        %v197 = vld [vmem:[%s172 + $0x78] sm:$0xff]
        %v198 = vld [vmem:[%s178] sm:$0xff]
        %v199 = vld [vmem:[%s178 + $0x8] sm:$0xff]
        %v200 = vld [vmem:[%s178 + $0x10] sm:$0xff]
        %v201 = vld [vmem:[%s178 + $0x18] sm:$0xff]
        %203 = vset.pattern.permute.xlu0 0
        %204 = vperm.xlu0 %203, %v182
        %v205 = vpop.permute.xlu0 %204
        %208 = vset.pattern.permute.xlu0 0
        %209 = vperm.xlu0 %208, %v183
        %v210 = vpop.permute.xlu0 %209
        %213 = vset.pattern.permute.xlu0 0
        %214 = vperm.xlu0 %213, %v184
        %v215 = vpop.permute.xlu0 %214
        %218 = vset.pattern.permute.xlu0 0
        %219 = vperm.xlu0 %218, %v185
        %v220 = vpop.permute.xlu0 %219
        %223 = vset.pattern.permute.xlu0 0
        %224 = vperm.xlu0 %223, %v186
        %v225 = vpop.permute.xlu0 %224
        %228 = vset.pattern.permute.xlu0 0
        %229 = vperm.xlu0 %228, %v187
        %v230 = vpop.permute.xlu0 %229
        %233 = vset.pattern.permute.xlu0 0
        %234 = vperm.xlu0 %233, %v188
        %v235 = vpop.permute.xlu0 %234
        %238 = vset.pattern.permute.xlu0 0
        %239 = vperm.xlu0 %238, %v189
        %v240 = vpop.permute.xlu0 %239
        %243 = vset.pattern.permute.xlu0 0
        %244 = vperm.xlu0 %243, %v190
        %v245 = vpop.permute.xlu0 %244
        %248 = vset.pattern.permute.xlu0 0
        %249 = vperm.xlu0 %248, %v191
        %v250 = vpop.permute.xlu0 %249
        %253 = vset.pattern.permute.xlu0 0
        %254 = vperm.xlu0 %253, %v192
        %v255 = vpop.permute.xlu0 %254
        %258 = vset.pattern.permute.xlu0 0
        %259 = vperm.xlu0 %258, %v193
        %v260 = vpop.permute.xlu0 %259
        %263 = vset.pattern.permute.xlu0 0
        %264 = vperm.xlu0 %263, %v194
        %v265 = vpop.permute.xlu0 %264
        %268 = vset.pattern.permute.xlu0 0
        %269 = vperm.xlu0 %268, %v195
        %v270 = vpop.permute.xlu0 %269
        %273 = vset.pattern.permute.xlu0 0
        %274 = vperm.xlu0 %273, %v196
        %v275 = vpop.permute.xlu0 %274
        %278 = vset.pattern.permute.xlu0 0
        %279 = vperm.xlu0 %278, %v197
        %v280 = vpop.permute.xlu0 %279
        %v282 = vlaneseq
        %v283 = vshrl.u32 %v282, 7
        %v284 = vsub.s32 0, %v283
        %v285 = vrot.slane %v198, %v284
        %v286 = vlaneseq
        %v287 = vshrl.u32 %v286, 7
        %v288 = vsub.s32 0, %v287
        %v289 = vrot.slane %v199, %v288
        %v290 = vsub.f32 %v205, %v285
        %v291 = vsub.f32 %v205, %v289
        %v292 = vsub.f32 %v210, %v285
        %v293 = vsub.f32 %v210, %v289
        %v294 = vsub.f32 %v215, %v285
        %v295 = vsub.f32 %v215, %v289
        %v296 = vsub.f32 %v220, %v285
        %v297 = vsub.f32 %v220, %v289
        %v298 = vsub.f32 %v225, %v285
        %v299 = vsub.f32 %v225, %v289
        %v300 = vsub.f32 %v230, %v285
        %v301 = vsub.f32 %v230, %v289
        %v302 = vsub.f32 %v235, %v285
        %v303 = vsub.f32 %v235, %v289
        %v304 = vsub.f32 %v240, %v285
        %v305 = vsub.f32 %v240, %v289
        %v306 = vsub.f32 %v245, %v285
        %v307 = vsub.f32 %v245, %v289
        %v308 = vsub.f32 %v250, %v285
        %v309 = vsub.f32 %v250, %v289
        %v310 = vsub.f32 %v255, %v285
        %v311 = vsub.f32 %v255, %v289
        %v312 = vsub.f32 %v260, %v285
        %v313 = vsub.f32 %v260, %v289
        %v314 = vsub.f32 %v265, %v285
        %v315 = vsub.f32 %v265, %v289
        %v316 = vsub.f32 %v270, %v285
        %v317 = vsub.f32 %v270, %v289
        %v318 = vsub.f32 %v275, %v285
        %v319 = vsub.f32 %v275, %v289
        %v320 = vsub.f32 %v280, %v285
        %v321 = vsub.f32 %v280, %v289
        %v322 = vand.u32 2147483647, %v290
        %v323 = vand.u32 2147483647, %v291
        %v324 = vand.u32 2147483647, %v292
        %v325 = vand.u32 2147483647, %v293
        %v326 = vand.u32 2147483647, %v294
        %v327 = vand.u32 2147483647, %v295
        %v328 = vand.u32 2147483647, %v296
        %v329 = vand.u32 2147483647, %v297
        %v330 = vand.u32 2147483647, %v298
        %v331 = vand.u32 2147483647, %v299
        %v332 = vand.u32 2147483647, %v300
        %v333 = vand.u32 2147483647, %v301
        %v334 = vand.u32 2147483647, %v302
        %v335 = vand.u32 2147483647, %v303
        %v336 = vand.u32 2147483647, %v304
        %v337 = vand.u32 2147483647, %v305
        %v338 = vand.u32 2147483647, %v306
        %v339 = vand.u32 2147483647, %v307
        %v340 = vand.u32 2147483647, %v308
        %v341 = vand.u32 2147483647, %v309
        %v342 = vand.u32 2147483647, %v310
        %v343 = vand.u32 2147483647, %v311
        %v344 = vand.u32 2147483647, %v312
        %v345 = vand.u32 2147483647, %v313
        %v346 = vand.u32 2147483647, %v314
        %v347 = vand.u32 2147483647, %v315
        %v348 = vand.u32 2147483647, %v316
        %v349 = vand.u32 2147483647, %v317
        %v350 = vand.u32 2147483647, %v318
        %v351 = vand.u32 2147483647, %v319
        %v352 = vand.u32 2147483647, %v320
        %v353 = vand.u32 2147483647, %v321
        %354 = vset.pattern.permute.xlu0 1
        %355 = vperm.xlu0 %354, %v182
        %v356 = vpop.permute.xlu0 %355
        %358 = vset.pattern.permute.xlu0 1
        %359 = vperm.xlu0 %358, %v183
        %v360 = vpop.permute.xlu0 %359
        %362 = vset.pattern.permute.xlu0 1
        %363 = vperm.xlu0 %362, %v184
        %v364 = vpop.permute.xlu0 %363
        %366 = vset.pattern.permute.xlu0 1
        %367 = vperm.xlu0 %366, %v185
        %v368 = vpop.permute.xlu0 %367
        %370 = vset.pattern.permute.xlu0 1
        %371 = vperm.xlu0 %370, %v186
        %v372 = vpop.permute.xlu0 %371
        %374 = vset.pattern.permute.xlu0 1
        %375 = vperm.xlu0 %374, %v187
        %v376 = vpop.permute.xlu0 %375
        %378 = vset.pattern.permute.xlu0 1
        %379 = vperm.xlu0 %378, %v188
        %v380 = vpop.permute.xlu0 %379
        %382 = vset.pattern.permute.xlu0 1
        %383 = vperm.xlu0 %382, %v189
        %v384 = vpop.permute.xlu0 %383
        %386 = vset.pattern.permute.xlu0 1
        %387 = vperm.xlu0 %386, %v190
        %v388 = vpop.permute.xlu0 %387
        %390 = vset.pattern.permute.xlu0 1
        %391 = vperm.xlu0 %390, %v191
        %v392 = vpop.permute.xlu0 %391
        %394 = vset.pattern.permute.xlu0 1
        %395 = vperm.xlu0 %394, %v192
        %v396 = vpop.permute.xlu0 %395
        %398 = vset.pattern.permute.xlu0 1
        %399 = vperm.xlu0 %398, %v193
        %v400 = vpop.permute.xlu0 %399
        %402 = vset.pattern.permute.xlu0 1
        %403 = vperm.xlu0 %402, %v194
        %v404 = vpop.permute.xlu0 %403
        %406 = vset.pattern.permute.xlu0 1
        %407 = vperm.xlu0 %406, %v195
        %v408 = vpop.permute.xlu0 %407
        %410 = vset.pattern.permute.xlu0 1
        %411 = vperm.xlu0 %410, %v196
        %v412 = vpop.permute.xlu0 %411
        %414 = vset.pattern.permute.xlu0 1
        %415 = vperm.xlu0 %414, %v197
        %v416 = vpop.permute.xlu0 %415
        %v418 = vlaneseq
        %v419 = vshrl.u32 %v418, 7
        %v420 = vsub.s32 1, %v419
        %v421 = vrot.slane %v198, %v420
        %v422 = vlaneseq
        %v423 = vshrl.u32 %v422, 7
        %v424 = vsub.s32 1, %v423
        %v425 = vrot.slane %v199, %v424
        %v426 = vsub.f32 %v356, %v421
        %v427 = vsub.f32 %v356, %v425
        %v428 = vsub.f32 %v360, %v421
        %v429 = vsub.f32 %v360, %v425
        %v430 = vsub.f32 %v364, %v421
        %v431 = vsub.f32 %v364, %v425
        %v432 = vsub.f32 %v368, %v421
        %v433 = vsub.f32 %v368, %v425
        %v434 = vsub.f32 %v372, %v421
        %v435 = vsub.f32 %v372, %v425
        %v436 = vsub.f32 %v376, %v421
        %v437 = vsub.f32 %v376, %v425
        %v438 = vsub.f32 %v380, %v421
        %v439 = vsub.f32 %v380, %v425
        %v440 = vsub.f32 %v384, %v421
        %v441 = vsub.f32 %v384, %v425
        %v442 = vsub.f32 %v388, %v421
        %v443 = vsub.f32 %v388, %v425
        %v444 = vsub.f32 %v392, %v421
        %v445 = vsub.f32 %v392, %v425
        %v446 = vsub.f32 %v396, %v421
        %v447 = vsub.f32 %v396, %v425
        %v448 = vsub.f32 %v400, %v421
        %v449 = vsub.f32 %v400, %v425
        %v450 = vsub.f32 %v404, %v421
        %v451 = vsub.f32 %v404, %v425
        %v452 = vsub.f32 %v408, %v421
        %v453 = vsub.f32 %v408, %v425
        %v454 = vsub.f32 %v412, %v421
        %v455 = vsub.f32 %v412, %v425
        %v456 = vsub.f32 %v416, %v421
        %v457 = vsub.f32 %v416, %v425
        %v458 = vand.u32 2147483647, %v426
        %v459 = vand.u32 2147483647, %v427
        %v460 = vand.u32 2147483647, %v428
        %v461 = vand.u32 2147483647, %v429
        %v462 = vand.u32 2147483647, %v430
        %v463 = vand.u32 2147483647, %v431
        %v464 = vand.u32 2147483647, %v432
        %v465 = vand.u32 2147483647, %v433
        %v466 = vand.u32 2147483647, %v434
        %v467 = vand.u32 2147483647, %v435
        %v468 = vand.u32 2147483647, %v436
        %v469 = vand.u32 2147483647, %v437
        %v470 = vand.u32 2147483647, %v438
        %v471 = vand.u32 2147483647, %v439
        %v472 = vand.u32 2147483647, %v440
        %v473 = vand.u32 2147483647, %v441
        %v474 = vand.u32 2147483647, %v442
        %v475 = vand.u32 2147483647, %v443
        %v476 = vand.u32 2147483647, %v444
        %v477 = vand.u32 2147483647, %v445
        %v478 = vand.u32 2147483647, %v446
        %v479 = vand.u32 2147483647, %v447
        %v480 = vand.u32 2147483647, %v448
        %v481 = vand.u32 2147483647, %v449
        %v482 = vand.u32 2147483647, %v450
        %v483 = vand.u32 2147483647, %v451
        %v484 = vand.u32 2147483647, %v452
        %v485 = vand.u32 2147483647, %v453
        %v486 = vand.u32 2147483647, %v454
        %v487 = vand.u32 2147483647, %v455
        %v488 = vand.u32 2147483647, %v456
        %v489 = vand.u32 2147483647, %v457
        %v490 = vadd.f32 %v322, %v458
        %v491 = vadd.f32 %v323, %v459
        %v492 = vadd.f32 %v324, %v460
        %v493 = vadd.f32 %v325, %v461
        %v494 = vadd.f32 %v326, %v462
        %v495 = vadd.f32 %v327, %v463
        %v496 = vadd.f32 %v328, %v464
        %v497 = vadd.f32 %v329, %v465
        %v498 = vadd.f32 %v330, %v466
        %v499 = vadd.f32 %v331, %v467
        %v500 = vadd.f32 %v332, %v468
        %v501 = vadd.f32 %v333, %v469
        %v502 = vadd.f32 %v334, %v470
        %v503 = vadd.f32 %v335, %v471
        %v504 = vadd.f32 %v336, %v472
        %v505 = vadd.f32 %v337, %v473
        %v506 = vadd.f32 %v338, %v474
        %v507 = vadd.f32 %v339, %v475
        %v508 = vadd.f32 %v340, %v476
        %v509 = vadd.f32 %v341, %v477
        %v510 = vadd.f32 %v342, %v478
        %v511 = vadd.f32 %v343, %v479
        %v512 = vadd.f32 %v344, %v480
        %v513 = vadd.f32 %v345, %v481
        %v514 = vadd.f32 %v346, %v482
        %v515 = vadd.f32 %v347, %v483
        %v516 = vadd.f32 %v348, %v484
        %v517 = vadd.f32 %v349, %v485
        %v518 = vadd.f32 %v350, %v486
        %v519 = vadd.f32 %v351, %v487
        %v520 = vadd.f32 %v352, %v488
        %v521 = vadd.f32 %v353, %v489
        %522 = vset.pattern.permute.xlu0 2
        %523 = vperm.xlu0 %522, %v182
        %v524 = vpop.permute.xlu0 %523
        %526 = vset.pattern.permute.xlu0 2
        %527 = vperm.xlu0 %526, %v183
        %v528 = vpop.permute.xlu0 %527
        %530 = vset.pattern.permute.xlu0 2
        %531 = vperm.xlu0 %530, %v184
        %v532 = vpop.permute.xlu0 %531
        %534 = vset.pattern.permute.xlu0 2
        %535 = vperm.xlu0 %534, %v185
        %v536 = vpop.permute.xlu0 %535
        %538 = vset.pattern.permute.xlu0 2
        %539 = vperm.xlu0 %538, %v186
        %v540 = vpop.permute.xlu0 %539
        %542 = vset.pattern.permute.xlu0 2
        %543 = vperm.xlu0 %542, %v187
        %v544 = vpop.permute.xlu0 %543
        %546 = vset.pattern.permute.xlu0 2
        %547 = vperm.xlu0 %546, %v188
        %v548 = vpop.permute.xlu0 %547
        %550 = vset.pattern.permute.xlu0 2
        %551 = vperm.xlu0 %550, %v189
        %v552 = vpop.permute.xlu0 %551
        %554 = vset.pattern.permute.xlu0 2
        %555 = vperm.xlu0 %554, %v190
        %v556 = vpop.permute.xlu0 %555
        %558 = vset.pattern.permute.xlu0 2
        %559 = vperm.xlu0 %558, %v191
        %v560 = vpop.permute.xlu0 %559
        %562 = vset.pattern.permute.xlu0 2
        %563 = vperm.xlu0 %562, %v192
        %v564 = vpop.permute.xlu0 %563
        %566 = vset.pattern.permute.xlu0 2
        %567 = vperm.xlu0 %566, %v193
        %v568 = vpop.permute.xlu0 %567
        %570 = vset.pattern.permute.xlu0 2
        %571 = vperm.xlu0 %570, %v194
        %v572 = vpop.permute.xlu0 %571
        %574 = vset.pattern.permute.xlu0 2
        %575 = vperm.xlu0 %574, %v195
        %v576 = vpop.permute.xlu0 %575
        %578 = vset.pattern.permute.xlu0 2
        %579 = vperm.xlu0 %578, %v196
        %v580 = vpop.permute.xlu0 %579
        %582 = vset.pattern.permute.xlu0 2
        %583 = vperm.xlu0 %582, %v197
        %v584 = vpop.permute.xlu0 %583
        %v586 = vlaneseq
        %v587 = vshrl.u32 %v586, 7
        %v588 = vsub.s32 2, %v587
        %v589 = vrot.slane %v198, %v588
        %v590 = vlaneseq
        %v591 = vshrl.u32 %v590, 7
        %v592 = vsub.s32 2, %v591
        %v593 = vrot.slane %v199, %v592
        %v594 = vsub.f32 %v524, %v589
        %v595 = vsub.f32 %v524, %v593
        %v596 = vsub.f32 %v528, %v589
        %v597 = vsub.f32 %v528, %v593
        %v598 = vsub.f32 %v532, %v589
        %v599 = vsub.f32 %v532, %v593
        %v600 = vsub.f32 %v536, %v589
        %v601 = vsub.f32 %v536, %v593
        %v602 = vsub.f32 %v540, %v589
        %v603 = vsub.f32 %v540, %v593
        %v604 = vsub.f32 %v544, %v589
        %v605 = vsub.f32 %v544, %v593
        %v606 = vsub.f32 %v548, %v589
        %v607 = vsub.f32 %v548, %v593
        %v608 = vsub.f32 %v552, %v589
        %v609 = vsub.f32 %v552, %v593
        %v610 = vsub.f32 %v556, %v589
        %v611 = vsub.f32 %v556, %v593
        %v612 = vsub.f32 %v560, %v589
        %v613 = vsub.f32 %v560, %v593
        %v614 = vsub.f32 %v564, %v589
        %v615 = vsub.f32 %v564, %v593
        %v616 = vsub.f32 %v568, %v589
        %v617 = vsub.f32 %v568, %v593
        %v618 = vsub.f32 %v572, %v589
        %v619 = vsub.f32 %v572, %v593
        %v620 = vsub.f32 %v576, %v589
        %v621 = vsub.f32 %v576, %v593
        %v622 = vsub.f32 %v580, %v589
        %v623 = vsub.f32 %v580, %v593
        %v624 = vsub.f32 %v584, %v589
        %v625 = vsub.f32 %v584, %v593
        %v626 = vand.u32 2147483647, %v594
        %v627 = vand.u32 2147483647, %v595
        %v628 = vand.u32 2147483647, %v596
        %v629 = vand.u32 2147483647, %v597
        %v630 = vand.u32 2147483647, %v598
        %v631 = vand.u32 2147483647, %v599
        %v632 = vand.u32 2147483647, %v600
        %v633 = vand.u32 2147483647, %v601
        %v634 = vand.u32 2147483647, %v602
        %v635 = vand.u32 2147483647, %v603
        %v636 = vand.u32 2147483647, %v604
        %v637 = vand.u32 2147483647, %v605
        %v638 = vand.u32 2147483647, %v606
        %v639 = vand.u32 2147483647, %v607
        %v640 = vand.u32 2147483647, %v608
        %v641 = vand.u32 2147483647, %v609
        %v642 = vand.u32 2147483647, %v610
        %v643 = vand.u32 2147483647, %v611
        %v644 = vand.u32 2147483647, %v612
        %v645 = vand.u32 2147483647, %v613
        %v646 = vand.u32 2147483647, %v614
        %v647 = vand.u32 2147483647, %v615
        %v648 = vand.u32 2147483647, %v616
        %v649 = vand.u32 2147483647, %v617
        %v650 = vand.u32 2147483647, %v618
        %v651 = vand.u32 2147483647, %v619
        %v652 = vand.u32 2147483647, %v620
        %v653 = vand.u32 2147483647, %v621
        %v654 = vand.u32 2147483647, %v622
        %v655 = vand.u32 2147483647, %v623
        %v656 = vand.u32 2147483647, %v624
        %v657 = vand.u32 2147483647, %v625
        %v658 = vadd.f32 %v490, %v626
        %v659 = vadd.f32 %v491, %v627
        %v660 = vadd.f32 %v492, %v628
        %v661 = vadd.f32 %v493, %v629
        %v662 = vadd.f32 %v494, %v630
        %v663 = vadd.f32 %v495, %v631
        %v664 = vadd.f32 %v496, %v632
        %v665 = vadd.f32 %v497, %v633
        %v666 = vadd.f32 %v498, %v634
        %v667 = vadd.f32 %v499, %v635
        %v668 = vadd.f32 %v500, %v636
        %v669 = vadd.f32 %v501, %v637
        %v670 = vadd.f32 %v502, %v638
        %v671 = vadd.f32 %v503, %v639
        %v672 = vadd.f32 %v504, %v640
        %v673 = vadd.f32 %v505, %v641
        %v674 = vadd.f32 %v506, %v642
        %v675 = vadd.f32 %v507, %v643
        %v676 = vadd.f32 %v508, %v644
        %v677 = vadd.f32 %v509, %v645
        %v678 = vadd.f32 %v510, %v646
        %v679 = vadd.f32 %v511, %v647
        %v680 = vadd.f32 %v512, %v648
        %v681 = vadd.f32 %v513, %v649
        %v682 = vadd.f32 %v514, %v650
        %v683 = vadd.f32 %v515, %v651
        %v684 = vadd.f32 %v516, %v652
        %v685 = vadd.f32 %v517, %v653
        %v686 = vadd.f32 %v518, %v654
        %v687 = vadd.f32 %v519, %v655
        %v688 = vadd.f32 %v520, %v656
        %v689 = vadd.f32 %v521, %v657
        %690 = vset.pattern.permute.xlu0 3
        %691 = vperm.xlu0 %690, %v182
        %v692 = vpop.permute.xlu0 %691
        %694 = vset.pattern.permute.xlu0 3
        %695 = vperm.xlu0 %694, %v183
        %v696 = vpop.permute.xlu0 %695
        %698 = vset.pattern.permute.xlu0 3
        %699 = vperm.xlu0 %698, %v184
        %v700 = vpop.permute.xlu0 %699
        %702 = vset.pattern.permute.xlu0 3
        %703 = vperm.xlu0 %702, %v185
        %v704 = vpop.permute.xlu0 %703
        %706 = vset.pattern.permute.xlu0 3
        %707 = vperm.xlu0 %706, %v186
        %v708 = vpop.permute.xlu0 %707
        %710 = vset.pattern.permute.xlu0 3
        %711 = vperm.xlu0 %710, %v187
        %v712 = vpop.permute.xlu0 %711
        %714 = vset.pattern.permute.xlu0 3
        %715 = vperm.xlu0 %714, %v188
        %v716 = vpop.permute.xlu0 %715
        %718 = vset.pattern.permute.xlu0 3
        %719 = vperm.xlu0 %718, %v189
        %v720 = vpop.permute.xlu0 %719
        %722 = vset.pattern.permute.xlu0 3
        %723 = vperm.xlu0 %722, %v190
        %v724 = vpop.permute.xlu0 %723
        %726 = vset.pattern.permute.xlu0 3
        %727 = vperm.xlu0 %726, %v191
        %v728 = vpop.permute.xlu0 %727
        %730 = vset.pattern.permute.xlu0 3
        %731 = vperm.xlu0 %730, %v192
        %v732 = vpop.permute.xlu0 %731
        %734 = vset.pattern.permute.xlu0 3
        %735 = vperm.xlu0 %734, %v193
        %v736 = vpop.permute.xlu0 %735
        %738 = vset.pattern.permute.xlu0 3
        %739 = vperm.xlu0 %738, %v194
        %v740 = vpop.permute.xlu0 %739
        %742 = vset.pattern.permute.xlu0 3
        %743 = vperm.xlu0 %742, %v195
        %v744 = vpop.permute.xlu0 %743
        %746 = vset.pattern.permute.xlu0 3
        %747 = vperm.xlu0 %746, %v196
        %v748 = vpop.permute.xlu0 %747
        %750 = vset.pattern.permute.xlu0 3
        %751 = vperm.xlu0 %750, %v197
        %v752 = vpop.permute.xlu0 %751
        %v754 = vlaneseq
        %v755 = vshrl.u32 %v754, 7
        %v756 = vsub.s32 3, %v755
        %v757 = vrot.slane %v198, %v756
        %v758 = vlaneseq
        %v759 = vshrl.u32 %v758, 7
        %v760 = vsub.s32 3, %v759
        %v761 = vrot.slane %v199, %v760
        %v762 = vsub.f32 %v692, %v757
        %v763 = vsub.f32 %v692, %v761
        %v764 = vsub.f32 %v696, %v757
        %v765 = vsub.f32 %v696, %v761
        %v766 = vsub.f32 %v700, %v757
        %v767 = vsub.f32 %v700, %v761
        %v768 = vsub.f32 %v704, %v757
        %v769 = vsub.f32 %v704, %v761
        %v770 = vsub.f32 %v708, %v757
        %v771 = vsub.f32 %v708, %v761
        %v772 = vsub.f32 %v712, %v757
        %v773 = vsub.f32 %v712, %v761
        %v774 = vsub.f32 %v716, %v757
        %v775 = vsub.f32 %v716, %v761
        %v776 = vsub.f32 %v720, %v757
        %v777 = vsub.f32 %v720, %v761
        %v778 = vsub.f32 %v724, %v757
        %v779 = vsub.f32 %v724, %v761
        %v780 = vsub.f32 %v728, %v757
        %v781 = vsub.f32 %v728, %v761
        %v782 = vsub.f32 %v732, %v757
        %v783 = vsub.f32 %v732, %v761
        %v784 = vsub.f32 %v736, %v757
        %v785 = vsub.f32 %v736, %v761
        %v786 = vsub.f32 %v740, %v757
        %v787 = vsub.f32 %v740, %v761
        %v788 = vsub.f32 %v744, %v757
        %v789 = vsub.f32 %v744, %v761
        %v790 = vsub.f32 %v748, %v757
        %v791 = vsub.f32 %v748, %v761
        %v792 = vsub.f32 %v752, %v757
        %v793 = vsub.f32 %v752, %v761
        %v794 = vand.u32 2147483647, %v762
        %v795 = vand.u32 2147483647, %v763
        %v796 = vand.u32 2147483647, %v764
        %v797 = vand.u32 2147483647, %v765
        %v798 = vand.u32 2147483647, %v766
        %v799 = vand.u32 2147483647, %v767
        %v800 = vand.u32 2147483647, %v768
        %v801 = vand.u32 2147483647, %v769
        %v802 = vand.u32 2147483647, %v770
        %v803 = vand.u32 2147483647, %v771
        %v804 = vand.u32 2147483647, %v772
        %v805 = vand.u32 2147483647, %v773
        %v806 = vand.u32 2147483647, %v774
        %v807 = vand.u32 2147483647, %v775
        %v808 = vand.u32 2147483647, %v776
        %v809 = vand.u32 2147483647, %v777
        %v810 = vand.u32 2147483647, %v778
        %v811 = vand.u32 2147483647, %v779
        %v812 = vand.u32 2147483647, %v780
        %v813 = vand.u32 2147483647, %v781
        %v814 = vand.u32 2147483647, %v782
        %v815 = vand.u32 2147483647, %v783
        %v816 = vand.u32 2147483647, %v784
        %v817 = vand.u32 2147483647, %v785
        %v818 = vand.u32 2147483647, %v786
        %v819 = vand.u32 2147483647, %v787
        %v820 = vand.u32 2147483647, %v788
        %v821 = vand.u32 2147483647, %v789
        %v822 = vand.u32 2147483647, %v790
        %v823 = vand.u32 2147483647, %v791
        %v824 = vand.u32 2147483647, %v792
        %v825 = vand.u32 2147483647, %v793
        %v826 = vadd.f32 %v658, %v794
        %v827 = vadd.f32 %v659, %v795
        %v828 = vadd.f32 %v660, %v796
        %v829 = vadd.f32 %v661, %v797
        %v830 = vadd.f32 %v662, %v798
        %v831 = vadd.f32 %v663, %v799
        %v832 = vadd.f32 %v664, %v800
        %v833 = vadd.f32 %v665, %v801
        %v834 = vadd.f32 %v666, %v802
        %v835 = vadd.f32 %v667, %v803
        %v836 = vadd.f32 %v668, %v804
        %v837 = vadd.f32 %v669, %v805
        %v838 = vadd.f32 %v670, %v806
        %v839 = vadd.f32 %v671, %v807
        %v840 = vadd.f32 %v672, %v808
        %v841 = vadd.f32 %v673, %v809
        %v842 = vadd.f32 %v674, %v810
        %v843 = vadd.f32 %v675, %v811
        %v844 = vadd.f32 %v676, %v812
        %v845 = vadd.f32 %v677, %v813
        %v846 = vadd.f32 %v678, %v814
        %v847 = vadd.f32 %v679, %v815
        %v848 = vadd.f32 %v680, %v816
        %v849 = vadd.f32 %v681, %v817
        %v850 = vadd.f32 %v682, %v818
        %v851 = vadd.f32 %v683, %v819
        %v852 = vadd.f32 %v684, %v820
        %v853 = vadd.f32 %v685, %v821
        %v854 = vadd.f32 %v686, %v822
        %v855 = vadd.f32 %v687, %v823
        %v856 = vadd.f32 %v688, %v824
        %v857 = vadd.f32 %v689, %v825
        %858 = vset.pattern.permute.xlu0 4
        %859 = vperm.xlu0 %858, %v182
        %v860 = vpop.permute.xlu0 %859
        %862 = vset.pattern.permute.xlu0 4
        %863 = vperm.xlu0 %862, %v183
        %v864 = vpop.permute.xlu0 %863
        %866 = vset.pattern.permute.xlu0 4
        %867 = vperm.xlu0 %866, %v184
        %v868 = vpop.permute.xlu0 %867
        %870 = vset.pattern.permute.xlu0 4
        %871 = vperm.xlu0 %870, %v185
        %v872 = vpop.permute.xlu0 %871
        %874 = vset.pattern.permute.xlu0 4
        %875 = vperm.xlu0 %874, %v186
        %v876 = vpop.permute.xlu0 %875
        %878 = vset.pattern.permute.xlu0 4
        %879 = vperm.xlu0 %878, %v187
        %v880 = vpop.permute.xlu0 %879
        %882 = vset.pattern.permute.xlu0 4
        %883 = vperm.xlu0 %882, %v188
        %v884 = vpop.permute.xlu0 %883
        %886 = vset.pattern.permute.xlu0 4
        %887 = vperm.xlu0 %886, %v189
        %v888 = vpop.permute.xlu0 %887
        %890 = vset.pattern.permute.xlu0 4
        %891 = vperm.xlu0 %890, %v190
        %v892 = vpop.permute.xlu0 %891
        %894 = vset.pattern.permute.xlu0 4
        %895 = vperm.xlu0 %894, %v191
        %v896 = vpop.permute.xlu0 %895
        %898 = vset.pattern.permute.xlu0 4
        %899 = vperm.xlu0 %898, %v192
        %v900 = vpop.permute.xlu0 %899
        %902 = vset.pattern.permute.xlu0 4
        %903 = vperm.xlu0 %902, %v193
        %v904 = vpop.permute.xlu0 %903
        %906 = vset.pattern.permute.xlu0 4
        %907 = vperm.xlu0 %906, %v194
        %v908 = vpop.permute.xlu0 %907
        %910 = vset.pattern.permute.xlu0 4
        %911 = vperm.xlu0 %910, %v195
        %v912 = vpop.permute.xlu0 %911
        %914 = vset.pattern.permute.xlu0 4
        %915 = vperm.xlu0 %914, %v196
        %v916 = vpop.permute.xlu0 %915
        %918 = vset.pattern.permute.xlu0 4
        %919 = vperm.xlu0 %918, %v197
        %v920 = vpop.permute.xlu0 %919
        %v922 = vlaneseq
        %v923 = vshrl.u32 %v922, 7
        %v924 = vsub.s32 4, %v923
        %v925 = vrot.slane %v198, %v924
        %v926 = vlaneseq
        %v927 = vshrl.u32 %v926, 7
        %v928 = vsub.s32 4, %v927
        %v929 = vrot.slane %v199, %v928
        %v930 = vsub.f32 %v860, %v925
        %v931 = vsub.f32 %v860, %v929
        %v932 = vsub.f32 %v864, %v925
        %v933 = vsub.f32 %v864, %v929
        %v934 = vsub.f32 %v868, %v925
        %v935 = vsub.f32 %v868, %v929
        %v936 = vsub.f32 %v872, %v925
        %v937 = vsub.f32 %v872, %v929
        %v938 = vsub.f32 %v876, %v925
        %v939 = vsub.f32 %v876, %v929
        %v940 = vsub.f32 %v880, %v925
        %v941 = vsub.f32 %v880, %v929
        %v942 = vsub.f32 %v884, %v925
        %v943 = vsub.f32 %v884, %v929
        %v944 = vsub.f32 %v888, %v925
        %v945 = vsub.f32 %v888, %v929
        %v946 = vsub.f32 %v892, %v925
        %v947 = vsub.f32 %v892, %v929
        %v948 = vsub.f32 %v896, %v925
        %v949 = vsub.f32 %v896, %v929
        %v950 = vsub.f32 %v900, %v925
        %v951 = vsub.f32 %v900, %v929
        %v952 = vsub.f32 %v904, %v925
        %v953 = vsub.f32 %v904, %v929
        %v954 = vsub.f32 %v908, %v925
        %v955 = vsub.f32 %v908, %v929
        %v956 = vsub.f32 %v912, %v925
        %v957 = vsub.f32 %v912, %v929
        %v958 = vsub.f32 %v916, %v925
        %v959 = vsub.f32 %v916, %v929
        %v960 = vsub.f32 %v920, %v925
        %v961 = vsub.f32 %v920, %v929
        %v962 = vand.u32 2147483647, %v930
        %v963 = vand.u32 2147483647, %v931
        %v964 = vand.u32 2147483647, %v932
        %v965 = vand.u32 2147483647, %v933
        %v966 = vand.u32 2147483647, %v934
        %v967 = vand.u32 2147483647, %v935
        %v968 = vand.u32 2147483647, %v936
        %v969 = vand.u32 2147483647, %v937
        %v970 = vand.u32 2147483647, %v938
        %v971 = vand.u32 2147483647, %v939
        %v972 = vand.u32 2147483647, %v940
        %v973 = vand.u32 2147483647, %v941
        %v974 = vand.u32 2147483647, %v942
        %v975 = vand.u32 2147483647, %v943
        %v976 = vand.u32 2147483647, %v944
        %v977 = vand.u32 2147483647, %v945
        %v978 = vand.u32 2147483647, %v946
        %v979 = vand.u32 2147483647, %v947
        %v980 = vand.u32 2147483647, %v948
        %v981 = vand.u32 2147483647, %v949
        %v982 = vand.u32 2147483647, %v950
        %v983 = vand.u32 2147483647, %v951
        %v984 = vand.u32 2147483647, %v952
        %v985 = vand.u32 2147483647, %v953
        %v986 = vand.u32 2147483647, %v954
        %v987 = vand.u32 2147483647, %v955
        %v988 = vand.u32 2147483647, %v956
        %v989 = vand.u32 2147483647, %v957
        %v990 = vand.u32 2147483647, %v958
        %v991 = vand.u32 2147483647, %v959
        %v992 = vand.u32 2147483647, %v960
        %v993 = vand.u32 2147483647, %v961
        %v994 = vadd.f32 %v826, %v962
        %v995 = vadd.f32 %v827, %v963
        %v996 = vadd.f32 %v828, %v964
        %v997 = vadd.f32 %v829, %v965
        %v998 = vadd.f32 %v830, %v966
        %v999 = vadd.f32 %v831, %v967
        %v1000 = vadd.f32 %v832, %v968
        %v1001 = vadd.f32 %v833, %v969
        %v1002 = vadd.f32 %v834, %v970
        %v1003 = vadd.f32 %v835, %v971
        %v1004 = vadd.f32 %v836, %v972
        %v1005 = vadd.f32 %v837, %v973
        %v1006 = vadd.f32 %v838, %v974
        %v1007 = vadd.f32 %v839, %v975
        %v1008 = vadd.f32 %v840, %v976
        %v1009 = vadd.f32 %v841, %v977
        %v1010 = vadd.f32 %v842, %v978
        %v1011 = vadd.f32 %v843, %v979
        %v1012 = vadd.f32 %v844, %v980
        %v1013 = vadd.f32 %v845, %v981
        %v1014 = vadd.f32 %v846, %v982
        %v1015 = vadd.f32 %v847, %v983
        %v1016 = vadd.f32 %v848, %v984
        %v1017 = vadd.f32 %v849, %v985
        %v1018 = vadd.f32 %v850, %v986
        %v1019 = vadd.f32 %v851, %v987
        %v1020 = vadd.f32 %v852, %v988
        %v1021 = vadd.f32 %v853, %v989
        %v1022 = vadd.f32 %v854, %v990
        %v1023 = vadd.f32 %v855, %v991
        %v1024 = vadd.f32 %v856, %v992
        %v1025 = vadd.f32 %v857, %v993
        %1026 = vset.pattern.permute.xlu0 5
        %1027 = vperm.xlu0 %1026, %v182
        %v1028 = vpop.permute.xlu0 %1027
        %1030 = vset.pattern.permute.xlu0 5
        %1031 = vperm.xlu0 %1030, %v183
        %v1032 = vpop.permute.xlu0 %1031
        %1034 = vset.pattern.permute.xlu0 5
        %1035 = vperm.xlu0 %1034, %v184
        %v1036 = vpop.permute.xlu0 %1035
        %1038 = vset.pattern.permute.xlu0 5
        %1039 = vperm.xlu0 %1038, %v185
        %v1040 = vpop.permute.xlu0 %1039
        %1042 = vset.pattern.permute.xlu0 5
        %1043 = vperm.xlu0 %1042, %v186
        %v1044 = vpop.permute.xlu0 %1043
        %1046 = vset.pattern.permute.xlu0 5
        %1047 = vperm.xlu0 %1046, %v187
        %v1048 = vpop.permute.xlu0 %1047
        %1050 = vset.pattern.permute.xlu0 5
        %1051 = vperm.xlu0 %1050, %v188
        %v1052 = vpop.permute.xlu0 %1051
        %1054 = vset.pattern.permute.xlu0 5
        %1055 = vperm.xlu0 %1054, %v189
        %v1056 = vpop.permute.xlu0 %1055
        %1058 = vset.pattern.permute.xlu0 5
        %1059 = vperm.xlu0 %1058, %v190
        %v1060 = vpop.permute.xlu0 %1059
        %1062 = vset.pattern.permute.xlu0 5
        %1063 = vperm.xlu0 %1062, %v191
        %v1064 = vpop.permute.xlu0 %1063
        %1066 = vset.pattern.permute.xlu0 5
        %1067 = vperm.xlu0 %1066, %v192
        %v1068 = vpop.permute.xlu0 %1067
        %1070 = vset.pattern.permute.xlu0 5
        %1071 = vperm.xlu0 %1070, %v193
        %v1072 = vpop.permute.xlu0 %1071
        %1074 = vset.pattern.permute.xlu0 5
        %1075 = vperm.xlu0 %1074, %v194
        %v1076 = vpop.permute.xlu0 %1075
        %1078 = vset.pattern.permute.xlu0 5
        %1079 = vperm.xlu0 %1078, %v195
        %v1080 = vpop.permute.xlu0 %1079
        %1082 = vset.pattern.permute.xlu0 5
        %1083 = vperm.xlu0 %1082, %v196
        %v1084 = vpop.permute.xlu0 %1083
        %1086 = vset.pattern.permute.xlu0 5
        %1087 = vperm.xlu0 %1086, %v197
        %v1088 = vpop.permute.xlu0 %1087
        %v1090 = vlaneseq
        %v1091 = vshrl.u32 %v1090, 7
        %v1092 = vsub.s32 5, %v1091
        %v1093 = vrot.slane %v198, %v1092
        %v1094 = vlaneseq
        %v1095 = vshrl.u32 %v1094, 7
        %v1096 = vsub.s32 5, %v1095
        %v1097 = vrot.slane %v199, %v1096
        %v1098 = vsub.f32 %v1028, %v1093
        %v1099 = vsub.f32 %v1028, %v1097
        %v1100 = vsub.f32 %v1032, %v1093
        %v1101 = vsub.f32 %v1032, %v1097
        %v1102 = vsub.f32 %v1036, %v1093
        %v1103 = vsub.f32 %v1036, %v1097
        %v1104 = vsub.f32 %v1040, %v1093
        %v1105 = vsub.f32 %v1040, %v1097
        %v1106 = vsub.f32 %v1044, %v1093
        %v1107 = vsub.f32 %v1044, %v1097
        %v1108 = vsub.f32 %v1048, %v1093
        %v1109 = vsub.f32 %v1048, %v1097
        %v1110 = vsub.f32 %v1052, %v1093
        %v1111 = vsub.f32 %v1052, %v1097
        %v1112 = vsub.f32 %v1056, %v1093
        %v1113 = vsub.f32 %v1056, %v1097
        %v1114 = vsub.f32 %v1060, %v1093
        %v1115 = vsub.f32 %v1060, %v1097
        %v1116 = vsub.f32 %v1064, %v1093
        %v1117 = vsub.f32 %v1064, %v1097
        %v1118 = vsub.f32 %v1068, %v1093
        %v1119 = vsub.f32 %v1068, %v1097
        %v1120 = vsub.f32 %v1072, %v1093
        %v1121 = vsub.f32 %v1072, %v1097
        %v1122 = vsub.f32 %v1076, %v1093
        %v1123 = vsub.f32 %v1076, %v1097
        %v1124 = vsub.f32 %v1080, %v1093
        %v1125 = vsub.f32 %v1080, %v1097
        %v1126 = vsub.f32 %v1084, %v1093
        %v1127 = vsub.f32 %v1084, %v1097
        %v1128 = vsub.f32 %v1088, %v1093
        %v1129 = vsub.f32 %v1088, %v1097
        %v1130 = vand.u32 2147483647, %v1098
        %v1131 = vand.u32 2147483647, %v1099
        %v1132 = vand.u32 2147483647, %v1100
        %v1133 = vand.u32 2147483647, %v1101
        %v1134 = vand.u32 2147483647, %v1102
        %v1135 = vand.u32 2147483647, %v1103
        %v1136 = vand.u32 2147483647, %v1104
        %v1137 = vand.u32 2147483647, %v1105
        %v1138 = vand.u32 2147483647, %v1106
        %v1139 = vand.u32 2147483647, %v1107
        %v1140 = vand.u32 2147483647, %v1108
        %v1141 = vand.u32 2147483647, %v1109
        %v1142 = vand.u32 2147483647, %v1110
        %v1143 = vand.u32 2147483647, %v1111
        %v1144 = vand.u32 2147483647, %v1112
        %v1145 = vand.u32 2147483647, %v1113
        %v1146 = vand.u32 2147483647, %v1114
        %v1147 = vand.u32 2147483647, %v1115
        %v1148 = vand.u32 2147483647, %v1116
        %v1149 = vand.u32 2147483647, %v1117
        %v1150 = vand.u32 2147483647, %v1118
        %v1151 = vand.u32 2147483647, %v1119
        %v1152 = vand.u32 2147483647, %v1120
        %v1153 = vand.u32 2147483647, %v1121
        %v1154 = vand.u32 2147483647, %v1122
        %v1155 = vand.u32 2147483647, %v1123
        %v1156 = vand.u32 2147483647, %v1124
        %v1157 = vand.u32 2147483647, %v1125
        %v1158 = vand.u32 2147483647, %v1126
        %v1159 = vand.u32 2147483647, %v1127
        %v1160 = vand.u32 2147483647, %v1128
        %v1161 = vand.u32 2147483647, %v1129
        %v1162 = vadd.f32 %v994, %v1130
        %v1163 = vadd.f32 %v995, %v1131
        %v1164 = vadd.f32 %v996, %v1132
        %v1165 = vadd.f32 %v997, %v1133
        %v1166 = vadd.f32 %v998, %v1134
        %v1167 = vadd.f32 %v999, %v1135
        %v1168 = vadd.f32 %v1000, %v1136
        %v1169 = vadd.f32 %v1001, %v1137
        %v1170 = vadd.f32 %v1002, %v1138
        %v1171 = vadd.f32 %v1003, %v1139
        %v1172 = vadd.f32 %v1004, %v1140
        %v1173 = vadd.f32 %v1005, %v1141
        %v1174 = vadd.f32 %v1006, %v1142
        %v1175 = vadd.f32 %v1007, %v1143
        %v1176 = vadd.f32 %v1008, %v1144
        %v1177 = vadd.f32 %v1009, %v1145
        %v1178 = vadd.f32 %v1010, %v1146
        %v1179 = vadd.f32 %v1011, %v1147
        %v1180 = vadd.f32 %v1012, %v1148
        %v1181 = vadd.f32 %v1013, %v1149
        %v1182 = vadd.f32 %v1014, %v1150
        %v1183 = vadd.f32 %v1015, %v1151
        %v1184 = vadd.f32 %v1016, %v1152
        %v1185 = vadd.f32 %v1017, %v1153
        %v1186 = vadd.f32 %v1018, %v1154
        %v1187 = vadd.f32 %v1019, %v1155
        %v1188 = vadd.f32 %v1020, %v1156
        %v1189 = vadd.f32 %v1021, %v1157
        %v1190 = vadd.f32 %v1022, %v1158
        %v1191 = vadd.f32 %v1023, %v1159
        %v1192 = vadd.f32 %v1024, %v1160
        %v1193 = vadd.f32 %v1025, %v1161
        %1194 = vset.pattern.permute.xlu0 6
        %1195 = vperm.xlu0 %1194, %v182
        %v1196 = vpop.permute.xlu0 %1195
        %1198 = vset.pattern.permute.xlu0 6
        %1199 = vperm.xlu0 %1198, %v183
        %v1200 = vpop.permute.xlu0 %1199
        %1202 = vset.pattern.permute.xlu0 6
        %1203 = vperm.xlu0 %1202, %v184
        %v1204 = vpop.permute.xlu0 %1203
        %1206 = vset.pattern.permute.xlu0 6
        %1207 = vperm.xlu0 %1206, %v185
        %v1208 = vpop.permute.xlu0 %1207
        %1210 = vset.pattern.permute.xlu0 6
        %1211 = vperm.xlu0 %1210, %v186
        %v1212 = vpop.permute.xlu0 %1211
        %1214 = vset.pattern.permute.xlu0 6
        %1215 = vperm.xlu0 %1214, %v187
        %v1216 = vpop.permute.xlu0 %1215
        %1218 = vset.pattern.permute.xlu0 6
        %1219 = vperm.xlu0 %1218, %v188
        %v1220 = vpop.permute.xlu0 %1219
        %1222 = vset.pattern.permute.xlu0 6
        %1223 = vperm.xlu0 %1222, %v189
        %v1224 = vpop.permute.xlu0 %1223
        %1226 = vset.pattern.permute.xlu0 6
        %1227 = vperm.xlu0 %1226, %v190
        %v1228 = vpop.permute.xlu0 %1227
        %1230 = vset.pattern.permute.xlu0 6
        %1231 = vperm.xlu0 %1230, %v191
        %v1232 = vpop.permute.xlu0 %1231
        %1234 = vset.pattern.permute.xlu0 6
        %1235 = vperm.xlu0 %1234, %v192
        %v1236 = vpop.permute.xlu0 %1235
        %1238 = vset.pattern.permute.xlu0 6
        %1239 = vperm.xlu0 %1238, %v193
        %v1240 = vpop.permute.xlu0 %1239
        %1242 = vset.pattern.permute.xlu0 6
        %1243 = vperm.xlu0 %1242, %v194
        %v1244 = vpop.permute.xlu0 %1243
        %1246 = vset.pattern.permute.xlu0 6
        %1247 = vperm.xlu0 %1246, %v195
        %v1248 = vpop.permute.xlu0 %1247
        %1250 = vset.pattern.permute.xlu0 6
        %1251 = vperm.xlu0 %1250, %v196
        %v1252 = vpop.permute.xlu0 %1251
        %1254 = vset.pattern.permute.xlu0 6
        %1255 = vperm.xlu0 %1254, %v197
        %v1256 = vpop.permute.xlu0 %1255
        %v1258 = vlaneseq
        %v1259 = vshrl.u32 %v1258, 7
        %v1260 = vsub.s32 6, %v1259
        %v1261 = vrot.slane %v198, %v1260
        %v1262 = vlaneseq
        %v1263 = vshrl.u32 %v1262, 7
        %v1264 = vsub.s32 6, %v1263
        %v1265 = vrot.slane %v199, %v1264
        %v1266 = vsub.f32 %v1196, %v1261
        %v1267 = vsub.f32 %v1196, %v1265
        %v1268 = vsub.f32 %v1200, %v1261
        %v1269 = vsub.f32 %v1200, %v1265
        %v1270 = vsub.f32 %v1204, %v1261
        %v1271 = vsub.f32 %v1204, %v1265
        %v1272 = vsub.f32 %v1208, %v1261
        %v1273 = vsub.f32 %v1208, %v1265
        %v1274 = vsub.f32 %v1212, %v1261
        %v1275 = vsub.f32 %v1212, %v1265
        %v1276 = vsub.f32 %v1216, %v1261
        %v1277 = vsub.f32 %v1216, %v1265
        %v1278 = vsub.f32 %v1220, %v1261
        %v1279 = vsub.f32 %v1220, %v1265
        %v1280 = vsub.f32 %v1224, %v1261
        %v1281 = vsub.f32 %v1224, %v1265
        %v1282 = vsub.f32 %v1228, %v1261
        %v1283 = vsub.f32 %v1228, %v1265
        %v1284 = vsub.f32 %v1232, %v1261
        %v1285 = vsub.f32 %v1232, %v1265
        %v1286 = vsub.f32 %v1236, %v1261
        %v1287 = vsub.f32 %v1236, %v1265
        %v1288 = vsub.f32 %v1240, %v1261
        %v1289 = vsub.f32 %v1240, %v1265
        %v1290 = vsub.f32 %v1244, %v1261
        %v1291 = vsub.f32 %v1244, %v1265
        %v1292 = vsub.f32 %v1248, %v1261
        %v1293 = vsub.f32 %v1248, %v1265
        %v1294 = vsub.f32 %v1252, %v1261
        %v1295 = vsub.f32 %v1252, %v1265
        %v1296 = vsub.f32 %v1256, %v1261
        %v1297 = vsub.f32 %v1256, %v1265
        %v1298 = vand.u32 2147483647, %v1266
        %v1299 = vand.u32 2147483647, %v1267
        %v1300 = vand.u32 2147483647, %v1268
        %v1301 = vand.u32 2147483647, %v1269
        %v1302 = vand.u32 2147483647, %v1270
        %v1303 = vand.u32 2147483647, %v1271
        %v1304 = vand.u32 2147483647, %v1272
        %v1305 = vand.u32 2147483647, %v1273
        %v1306 = vand.u32 2147483647, %v1274
        %v1307 = vand.u32 2147483647, %v1275
        %v1308 = vand.u32 2147483647, %v1276
        %v1309 = vand.u32 2147483647, %v1277
        %v1310 = vand.u32 2147483647, %v1278
        %v1311 = vand.u32 2147483647, %v1279
        %v1312 = vand.u32 2147483647, %v1280
        %v1313 = vand.u32 2147483647, %v1281
        %v1314 = vand.u32 2147483647, %v1282
        %v1315 = vand.u32 2147483647, %v1283
        %v1316 = vand.u32 2147483647, %v1284
        %v1317 = vand.u32 2147483647, %v1285
        %v1318 = vand.u32 2147483647, %v1286
        %v1319 = vand.u32 2147483647, %v1287
        %v1320 = vand.u32 2147483647, %v1288
        %v1321 = vand.u32 2147483647, %v1289
        %v1322 = vand.u32 2147483647, %v1290
        %v1323 = vand.u32 2147483647, %v1291
        %v1324 = vand.u32 2147483647, %v1292
        %v1325 = vand.u32 2147483647, %v1293
        %v1326 = vand.u32 2147483647, %v1294
        %v1327 = vand.u32 2147483647, %v1295
        %v1328 = vand.u32 2147483647, %v1296
        %v1329 = vand.u32 2147483647, %v1297
        %v1330 = vadd.f32 %v1162, %v1298
        %v1331 = vadd.f32 %v1163, %v1299
        %v1332 = vadd.f32 %v1164, %v1300
        %v1333 = vadd.f32 %v1165, %v1301
        %v1334 = vadd.f32 %v1166, %v1302
        %v1335 = vadd.f32 %v1167, %v1303
        %v1336 = vadd.f32 %v1168, %v1304
        %v1337 = vadd.f32 %v1169, %v1305
        %v1338 = vadd.f32 %v1170, %v1306
        %v1339 = vadd.f32 %v1171, %v1307
        %v1340 = vadd.f32 %v1172, %v1308
        %v1341 = vadd.f32 %v1173, %v1309
        %v1342 = vadd.f32 %v1174, %v1310
        %v1343 = vadd.f32 %v1175, %v1311
        %v1344 = vadd.f32 %v1176, %v1312
        %v1345 = vadd.f32 %v1177, %v1313
        %v1346 = vadd.f32 %v1178, %v1314
        %v1347 = vadd.f32 %v1179, %v1315
        %v1348 = vadd.f32 %v1180, %v1316
        %v1349 = vadd.f32 %v1181, %v1317
        %v1350 = vadd.f32 %v1182, %v1318
        %v1351 = vadd.f32 %v1183, %v1319
        %v1352 = vadd.f32 %v1184, %v1320
        %v1353 = vadd.f32 %v1185, %v1321
        %v1354 = vadd.f32 %v1186, %v1322
        %v1355 = vadd.f32 %v1187, %v1323
        %v1356 = vadd.f32 %v1188, %v1324
        %v1357 = vadd.f32 %v1189, %v1325
        %v1358 = vadd.f32 %v1190, %v1326
        %v1359 = vadd.f32 %v1191, %v1327
        %v1360 = vadd.f32 %v1192, %v1328
        %v1361 = vadd.f32 %v1193, %v1329
        %1362 = vset.pattern.permute.xlu0 7
        %1363 = vperm.xlu0 %1362, %v182
        %v1364 = vpop.permute.xlu0 %1363
        %1366 = vset.pattern.permute.xlu0 7
        %1367 = vperm.xlu0 %1366, %v183
        %v1368 = vpop.permute.xlu0 %1367
        %1370 = vset.pattern.permute.xlu0 7
        %1371 = vperm.xlu0 %1370, %v184
        %v1372 = vpop.permute.xlu0 %1371
        %1374 = vset.pattern.permute.xlu0 7
        %1375 = vperm.xlu0 %1374, %v185
        %v1376 = vpop.permute.xlu0 %1375
        %1378 = vset.pattern.permute.xlu0 7
        %1379 = vperm.xlu0 %1378, %v186
        %v1380 = vpop.permute.xlu0 %1379
        %1382 = vset.pattern.permute.xlu0 7
        %1383 = vperm.xlu0 %1382, %v187
        %v1384 = vpop.permute.xlu0 %1383
        %1386 = vset.pattern.permute.xlu0 7
        %1387 = vperm.xlu0 %1386, %v188
        %v1388 = vpop.permute.xlu0 %1387
        %1390 = vset.pattern.permute.xlu0 7
        %1391 = vperm.xlu0 %1390, %v189
        %v1392 = vpop.permute.xlu0 %1391
        %1394 = vset.pattern.permute.xlu0 7
        %1395 = vperm.xlu0 %1394, %v190
        %v1396 = vpop.permute.xlu0 %1395
        %1398 = vset.pattern.permute.xlu0 7
        %1399 = vperm.xlu0 %1398, %v191
        %v1400 = vpop.permute.xlu0 %1399
        %1402 = vset.pattern.permute.xlu0 7
        %1403 = vperm.xlu0 %1402, %v192
        %v1404 = vpop.permute.xlu0 %1403
        %1406 = vset.pattern.permute.xlu0 7
        %1407 = vperm.xlu0 %1406, %v193
        %v1408 = vpop.permute.xlu0 %1407
        %1410 = vset.pattern.permute.xlu0 7
        %1411 = vperm.xlu0 %1410, %v194
        %v1412 = vpop.permute.xlu0 %1411
        %1414 = vset.pattern.permute.xlu0 7
        %1415 = vperm.xlu0 %1414, %v195
        %v1416 = vpop.permute.xlu0 %1415
        %1418 = vset.pattern.permute.xlu0 7
        %1419 = vperm.xlu0 %1418, %v196
        %v1420 = vpop.permute.xlu0 %1419
        %1422 = vset.pattern.permute.xlu0 7
        %1423 = vperm.xlu0 %1422, %v197
        %v1424 = vpop.permute.xlu0 %1423
        %v1426 = vlaneseq
        %v1427 = vshrl.u32 %v1426, 7
        %v1428 = vsub.s32 7, %v1427
        %v1429 = vrot.slane %v198, %v1428
        %v1430 = vlaneseq
        %v1431 = vshrl.u32 %v1430, 7
        %v1432 = vsub.s32 7, %v1431
        %v1433 = vrot.slane %v199, %v1432
        %v1434 = vsub.f32 %v1364, %v1429
        %v1435 = vsub.f32 %v1364, %v1433
        %v1436 = vsub.f32 %v1368, %v1429
        %v1437 = vsub.f32 %v1368, %v1433
        %v1438 = vsub.f32 %v1372, %v1429
        %v1439 = vsub.f32 %v1372, %v1433
        %v1440 = vsub.f32 %v1376, %v1429
        %v1441 = vsub.f32 %v1376, %v1433
        %v1442 = vsub.f32 %v1380, %v1429
        %v1443 = vsub.f32 %v1380, %v1433
        %v1444 = vsub.f32 %v1384, %v1429
        %v1445 = vsub.f32 %v1384, %v1433
        %v1446 = vsub.f32 %v1388, %v1429
        %v1447 = vsub.f32 %v1388, %v1433
        %v1448 = vsub.f32 %v1392, %v1429
        %v1449 = vsub.f32 %v1392, %v1433
        %v1450 = vsub.f32 %v1396, %v1429
        %v1451 = vsub.f32 %v1396, %v1433
        %v1452 = vsub.f32 %v1400, %v1429
        %v1453 = vsub.f32 %v1400, %v1433
        %v1454 = vsub.f32 %v1404, %v1429
        %v1455 = vsub.f32 %v1404, %v1433
        %v1456 = vsub.f32 %v1408, %v1429
        %v1457 = vsub.f32 %v1408, %v1433
        %v1458 = vsub.f32 %v1412, %v1429
        %v1459 = vsub.f32 %v1412, %v1433
        %v1460 = vsub.f32 %v1416, %v1429
        %v1461 = vsub.f32 %v1416, %v1433
        %v1462 = vsub.f32 %v1420, %v1429
        %v1463 = vsub.f32 %v1420, %v1433
        %v1464 = vsub.f32 %v1424, %v1429
        %v1465 = vsub.f32 %v1424, %v1433
        %v1466 = vand.u32 2147483647, %v1434
        %v1467 = vand.u32 2147483647, %v1435
        %v1468 = vand.u32 2147483647, %v1436
        %v1469 = vand.u32 2147483647, %v1437
        %v1470 = vand.u32 2147483647, %v1438
        %v1471 = vand.u32 2147483647, %v1439
        %v1472 = vand.u32 2147483647, %v1440
        %v1473 = vand.u32 2147483647, %v1441
        %v1474 = vand.u32 2147483647, %v1442
        %v1475 = vand.u32 2147483647, %v1443
        %v1476 = vand.u32 2147483647, %v1444
        %v1477 = vand.u32 2147483647, %v1445
        %v1478 = vand.u32 2147483647, %v1446
        %v1479 = vand.u32 2147483647, %v1447
        %v1480 = vand.u32 2147483647, %v1448
        %v1481 = vand.u32 2147483647, %v1449
        %v1482 = vand.u32 2147483647, %v1450
        %v1483 = vand.u32 2147483647, %v1451
        %v1484 = vand.u32 2147483647, %v1452
        %v1485 = vand.u32 2147483647, %v1453
        %v1486 = vand.u32 2147483647, %v1454
        %v1487 = vand.u32 2147483647, %v1455
        %v1488 = vand.u32 2147483647, %v1456
        %v1489 = vand.u32 2147483647, %v1457
        %v1490 = vand.u32 2147483647, %v1458
        %v1491 = vand.u32 2147483647, %v1459
        %v1492 = vand.u32 2147483647, %v1460
        %v1493 = vand.u32 2147483647, %v1461
        %v1494 = vand.u32 2147483647, %v1462
        %v1495 = vand.u32 2147483647, %v1463
        %v1496 = vand.u32 2147483647, %v1464
        %v1497 = vand.u32 2147483647, %v1465
        %v1498 = vadd.f32 %v1330, %v1466
        %v1499 = vadd.f32 %v1331, %v1467
        %v1500 = vadd.f32 %v1332, %v1468
        %v1501 = vadd.f32 %v1333, %v1469
        %v1502 = vadd.f32 %v1334, %v1470
        %v1503 = vadd.f32 %v1335, %v1471
        %v1504 = vadd.f32 %v1336, %v1472
        %v1505 = vadd.f32 %v1337, %v1473
        %v1506 = vadd.f32 %v1338, %v1474
        %v1507 = vadd.f32 %v1339, %v1475
        %v1508 = vadd.f32 %v1340, %v1476
        %v1509 = vadd.f32 %v1341, %v1477
        %v1510 = vadd.f32 %v1342, %v1478
        %v1511 = vadd.f32 %v1343, %v1479
        %v1512 = vadd.f32 %v1344, %v1480
        %v1513 = vadd.f32 %v1345, %v1481
        %v1514 = vadd.f32 %v1346, %v1482
        %v1515 = vadd.f32 %v1347, %v1483
        %v1516 = vadd.f32 %v1348, %v1484
        %v1517 = vadd.f32 %v1349, %v1485
        %v1518 = vadd.f32 %v1350, %v1486
        %v1519 = vadd.f32 %v1351, %v1487
        %v1520 = vadd.f32 %v1352, %v1488
        %v1521 = vadd.f32 %v1353, %v1489
        %v1522 = vadd.f32 %v1354, %v1490
        %v1523 = vadd.f32 %v1355, %v1491
        %v1524 = vadd.f32 %v1356, %v1492
        %v1525 = vadd.f32 %v1357, %v1493
        %v1526 = vadd.f32 %v1358, %v1494
        %v1527 = vadd.f32 %v1359, %v1495
        %v1528 = vadd.f32 %v1360, %v1496
        %v1529 = vadd.f32 %v1361, %v1497
        %1530 = vset.pattern.permute.xlu0 8
        %1531 = vperm.xlu0 %1530, %v182
        %v1532 = vpop.permute.xlu0 %1531
        %1534 = vset.pattern.permute.xlu0 8
        %1535 = vperm.xlu0 %1534, %v183
        %v1536 = vpop.permute.xlu0 %1535
        %1538 = vset.pattern.permute.xlu0 8
        %1539 = vperm.xlu0 %1538, %v184
        %v1540 = vpop.permute.xlu0 %1539
        %1542 = vset.pattern.permute.xlu0 8
        %1543 = vperm.xlu0 %1542, %v185
        %v1544 = vpop.permute.xlu0 %1543
        %1546 = vset.pattern.permute.xlu0 8
        %1547 = vperm.xlu0 %1546, %v186
        %v1548 = vpop.permute.xlu0 %1547
        %1550 = vset.pattern.permute.xlu0 8
        %1551 = vperm.xlu0 %1550, %v187
        %v1552 = vpop.permute.xlu0 %1551
        %1554 = vset.pattern.permute.xlu0 8
        %1555 = vperm.xlu0 %1554, %v188
        %v1556 = vpop.permute.xlu0 %1555
        %1558 = vset.pattern.permute.xlu0 8
        %1559 = vperm.xlu0 %1558, %v189
        %v1560 = vpop.permute.xlu0 %1559
        %1562 = vset.pattern.permute.xlu0 8
        %1563 = vperm.xlu0 %1562, %v190
        %v1564 = vpop.permute.xlu0 %1563
        %1566 = vset.pattern.permute.xlu0 8
        %1567 = vperm.xlu0 %1566, %v191
        %v1568 = vpop.permute.xlu0 %1567
        %1570 = vset.pattern.permute.xlu0 8
        %1571 = vperm.xlu0 %1570, %v192
        %v1572 = vpop.permute.xlu0 %1571
        %1574 = vset.pattern.permute.xlu0 8
        %1575 = vperm.xlu0 %1574, %v193
        %v1576 = vpop.permute.xlu0 %1575
        %1578 = vset.pattern.permute.xlu0 8
        %1579 = vperm.xlu0 %1578, %v194
        %v1580 = vpop.permute.xlu0 %1579
        %1582 = vset.pattern.permute.xlu0 8
        %1583 = vperm.xlu0 %1582, %v195
        %v1584 = vpop.permute.xlu0 %1583
        %1586 = vset.pattern.permute.xlu0 8
        %1587 = vperm.xlu0 %1586, %v196
        %v1588 = vpop.permute.xlu0 %1587
        %1590 = vset.pattern.permute.xlu0 8
        %1591 = vperm.xlu0 %1590, %v197
        %v1592 = vpop.permute.xlu0 %1591
        %v1594 = vlaneseq
        %v1595 = vshrl.u32 %v1594, 7
        %v1596 = vsub.s32 0, %v1595
        %v1597 = vrot.slane %v200, %v1596
        %v1598 = vlaneseq
        %v1599 = vshrl.u32 %v1598, 7
        %v1600 = vsub.s32 0, %v1599
        %v1601 = vrot.slane %v201, %v1600
        %v1602 = vsub.f32 %v1532, %v1597
        %v1603 = vsub.f32 %v1532, %v1601
        %v1604 = vsub.f32 %v1536, %v1597
        %v1605 = vsub.f32 %v1536, %v1601
        %v1606 = vsub.f32 %v1540, %v1597
        %v1607 = vsub.f32 %v1540, %v1601
        %v1608 = vsub.f32 %v1544, %v1597
        %v1609 = vsub.f32 %v1544, %v1601
        %v1610 = vsub.f32 %v1548, %v1597
        %v1611 = vsub.f32 %v1548, %v1601
        %v1612 = vsub.f32 %v1552, %v1597
        %v1613 = vsub.f32 %v1552, %v1601
        %v1614 = vsub.f32 %v1556, %v1597
        %v1615 = vsub.f32 %v1556, %v1601
        %v1616 = vsub.f32 %v1560, %v1597
        %v1617 = vsub.f32 %v1560, %v1601
        %v1618 = vsub.f32 %v1564, %v1597
        %v1619 = vsub.f32 %v1564, %v1601
        %v1620 = vsub.f32 %v1568, %v1597
        %v1621 = vsub.f32 %v1568, %v1601
        %v1622 = vsub.f32 %v1572, %v1597
        %v1623 = vsub.f32 %v1572, %v1601
        %v1624 = vsub.f32 %v1576, %v1597
        %v1625 = vsub.f32 %v1576, %v1601
        %v1626 = vsub.f32 %v1580, %v1597
        %v1627 = vsub.f32 %v1580, %v1601
        %v1628 = vsub.f32 %v1584, %v1597
        %v1629 = vsub.f32 %v1584, %v1601
        %v1630 = vsub.f32 %v1588, %v1597
        %v1631 = vsub.f32 %v1588, %v1601
        %v1632 = vsub.f32 %v1592, %v1597
        %v1633 = vsub.f32 %v1592, %v1601
        %v1634 = vand.u32 2147483647, %v1602
        %v1635 = vand.u32 2147483647, %v1603
        %v1636 = vand.u32 2147483647, %v1604
        %v1637 = vand.u32 2147483647, %v1605
        %v1638 = vand.u32 2147483647, %v1606
        %v1639 = vand.u32 2147483647, %v1607
        %v1640 = vand.u32 2147483647, %v1608
        %v1641 = vand.u32 2147483647, %v1609
        %v1642 = vand.u32 2147483647, %v1610
        %v1643 = vand.u32 2147483647, %v1611
        %v1644 = vand.u32 2147483647, %v1612
        %v1645 = vand.u32 2147483647, %v1613
        %v1646 = vand.u32 2147483647, %v1614
        %v1647 = vand.u32 2147483647, %v1615
        %v1648 = vand.u32 2147483647, %v1616
        %v1649 = vand.u32 2147483647, %v1617
        %v1650 = vand.u32 2147483647, %v1618
        %v1651 = vand.u32 2147483647, %v1619
        %v1652 = vand.u32 2147483647, %v1620
        %v1653 = vand.u32 2147483647, %v1621
        %v1654 = vand.u32 2147483647, %v1622
        %v1655 = vand.u32 2147483647, %v1623
        %v1656 = vand.u32 2147483647, %v1624
        %v1657 = vand.u32 2147483647, %v1625
        %v1658 = vand.u32 2147483647, %v1626
        %v1659 = vand.u32 2147483647, %v1627
        %v1660 = vand.u32 2147483647, %v1628
        %v1661 = vand.u32 2147483647, %v1629
        %v1662 = vand.u32 2147483647, %v1630
        %v1663 = vand.u32 2147483647, %v1631
        %v1664 = vand.u32 2147483647, %v1632
        %v1665 = vand.u32 2147483647, %v1633
        %v1666 = vadd.f32 %v1498, %v1634
        %v1667 = vadd.f32 %v1499, %v1635
        %v1668 = vadd.f32 %v1500, %v1636
        %v1669 = vadd.f32 %v1501, %v1637
        %v1670 = vadd.f32 %v1502, %v1638
        %v1671 = vadd.f32 %v1503, %v1639
        %v1672 = vadd.f32 %v1504, %v1640
        %v1673 = vadd.f32 %v1505, %v1641
        %v1674 = vadd.f32 %v1506, %v1642
        %v1675 = vadd.f32 %v1507, %v1643
        %v1676 = vadd.f32 %v1508, %v1644
        %v1677 = vadd.f32 %v1509, %v1645
        %v1678 = vadd.f32 %v1510, %v1646
        %v1679 = vadd.f32 %v1511, %v1647
        %v1680 = vadd.f32 %v1512, %v1648
        %v1681 = vadd.f32 %v1513, %v1649
        %v1682 = vadd.f32 %v1514, %v1650
        %v1683 = vadd.f32 %v1515, %v1651
        %v1684 = vadd.f32 %v1516, %v1652
        %v1685 = vadd.f32 %v1517, %v1653
        %v1686 = vadd.f32 %v1518, %v1654
        %v1687 = vadd.f32 %v1519, %v1655
        %v1688 = vadd.f32 %v1520, %v1656
        %v1689 = vadd.f32 %v1521, %v1657
        %v1690 = vadd.f32 %v1522, %v1658
        %v1691 = vadd.f32 %v1523, %v1659
        %v1692 = vadd.f32 %v1524, %v1660
        %v1693 = vadd.f32 %v1525, %v1661
        %v1694 = vadd.f32 %v1526, %v1662
        %v1695 = vadd.f32 %v1527, %v1663
        %v1696 = vadd.f32 %v1528, %v1664
        %v1697 = vadd.f32 %v1529, %v1665
        %1698 = vset.pattern.permute.xlu0 9
        %1699 = vperm.xlu0 %1698, %v182
        %v1700 = vpop.permute.xlu0 %1699
        %1702 = vset.pattern.permute.xlu0 9
        %1703 = vperm.xlu0 %1702, %v183
        %v1704 = vpop.permute.xlu0 %1703
        %1706 = vset.pattern.permute.xlu0 9
        %1707 = vperm.xlu0 %1706, %v184
        %v1708 = vpop.permute.xlu0 %1707
        %1710 = vset.pattern.permute.xlu0 9
        %1711 = vperm.xlu0 %1710, %v185
        %v1712 = vpop.permute.xlu0 %1711
        %1714 = vset.pattern.permute.xlu0 9
        %1715 = vperm.xlu0 %1714, %v186
        %v1716 = vpop.permute.xlu0 %1715
        %1718 = vset.pattern.permute.xlu0 9
        %1719 = vperm.xlu0 %1718, %v187
        %v1720 = vpop.permute.xlu0 %1719
        %1722 = vset.pattern.permute.xlu0 9
        %1723 = vperm.xlu0 %1722, %v188
        %v1724 = vpop.permute.xlu0 %1723
        %1726 = vset.pattern.permute.xlu0 9
        %1727 = vperm.xlu0 %1726, %v189
        %v1728 = vpop.permute.xlu0 %1727
        %1730 = vset.pattern.permute.xlu0 9
        %1731 = vperm.xlu0 %1730, %v190
        %v1732 = vpop.permute.xlu0 %1731
        %1734 = vset.pattern.permute.xlu0 9
        %1735 = vperm.xlu0 %1734, %v191
        %v1736 = vpop.permute.xlu0 %1735
        %1738 = vset.pattern.permute.xlu0 9
        %1739 = vperm.xlu0 %1738, %v192
        %v1740 = vpop.permute.xlu0 %1739
        %1742 = vset.pattern.permute.xlu0 9
        %1743 = vperm.xlu0 %1742, %v193
        %v1744 = vpop.permute.xlu0 %1743
        %1746 = vset.pattern.permute.xlu0 9
        %1747 = vperm.xlu0 %1746, %v194
        %v1748 = vpop.permute.xlu0 %1747
        %1750 = vset.pattern.permute.xlu0 9
        %1751 = vperm.xlu0 %1750, %v195
        %v1752 = vpop.permute.xlu0 %1751
        %1754 = vset.pattern.permute.xlu0 9
        %1755 = vperm.xlu0 %1754, %v196
        %v1756 = vpop.permute.xlu0 %1755
        %1758 = vset.pattern.permute.xlu0 9
        %1759 = vperm.xlu0 %1758, %v197
        %v1760 = vpop.permute.xlu0 %1759
        %v1762 = vlaneseq
        %v1763 = vshrl.u32 %v1762, 7
        %v1764 = vsub.s32 1, %v1763
        %v1765 = vrot.slane %v200, %v1764
        %v1766 = vlaneseq
        %v1767 = vshrl.u32 %v1766, 7
        %v1768 = vsub.s32 1, %v1767
        %v1769 = vrot.slane %v201, %v1768
        %v1770 = vsub.f32 %v1700, %v1765
        %v1771 = vsub.f32 %v1700, %v1769
        %v1772 = vsub.f32 %v1704, %v1765
        %v1773 = vsub.f32 %v1704, %v1769
        %v1774 = vsub.f32 %v1708, %v1765
        %v1775 = vsub.f32 %v1708, %v1769
        %v1776 = vsub.f32 %v1712, %v1765
        %v1777 = vsub.f32 %v1712, %v1769
        %v1778 = vsub.f32 %v1716, %v1765
        %v1779 = vsub.f32 %v1716, %v1769
        %v1780 = vsub.f32 %v1720, %v1765
        %v1781 = vsub.f32 %v1720, %v1769
        %v1782 = vsub.f32 %v1724, %v1765
        %v1783 = vsub.f32 %v1724, %v1769
        %v1784 = vsub.f32 %v1728, %v1765
        %v1785 = vsub.f32 %v1728, %v1769
        %v1786 = vsub.f32 %v1732, %v1765
        %v1787 = vsub.f32 %v1732, %v1769
        %v1788 = vsub.f32 %v1736, %v1765
        %v1789 = vsub.f32 %v1736, %v1769
        %v1790 = vsub.f32 %v1740, %v1765
        %v1791 = vsub.f32 %v1740, %v1769
        %v1792 = vsub.f32 %v1744, %v1765
        %v1793 = vsub.f32 %v1744, %v1769
        %v1794 = vsub.f32 %v1748, %v1765
        %v1795 = vsub.f32 %v1748, %v1769
        %v1796 = vsub.f32 %v1752, %v1765
        %v1797 = vsub.f32 %v1752, %v1769
        %v1798 = vsub.f32 %v1756, %v1765
        %v1799 = vsub.f32 %v1756, %v1769
        %v1800 = vsub.f32 %v1760, %v1765
        %v1801 = vsub.f32 %v1760, %v1769
        %v1802 = vand.u32 2147483647, %v1770
        %v1803 = vand.u32 2147483647, %v1771
        %v1804 = vand.u32 2147483647, %v1772
        %v1805 = vand.u32 2147483647, %v1773
        %v1806 = vand.u32 2147483647, %v1774
        %v1807 = vand.u32 2147483647, %v1775
        %v1808 = vand.u32 2147483647, %v1776
        %v1809 = vand.u32 2147483647, %v1777
        %v1810 = vand.u32 2147483647, %v1778
        %v1811 = vand.u32 2147483647, %v1779
        %v1812 = vand.u32 2147483647, %v1780
        %v1813 = vand.u32 2147483647, %v1781
        %v1814 = vand.u32 2147483647, %v1782
        %v1815 = vand.u32 2147483647, %v1783
        %v1816 = vand.u32 2147483647, %v1784
        %v1817 = vand.u32 2147483647, %v1785
        %v1818 = vand.u32 2147483647, %v1786
        %v1819 = vand.u32 2147483647, %v1787
        %v1820 = vand.u32 2147483647, %v1788
        %v1821 = vand.u32 2147483647, %v1789
        %v1822 = vand.u32 2147483647, %v1790
        %v1823 = vand.u32 2147483647, %v1791
        %v1824 = vand.u32 2147483647, %v1792
        %v1825 = vand.u32 2147483647, %v1793
        %v1826 = vand.u32 2147483647, %v1794
        %v1827 = vand.u32 2147483647, %v1795
        %v1828 = vand.u32 2147483647, %v1796
        %v1829 = vand.u32 2147483647, %v1797
        %v1830 = vand.u32 2147483647, %v1798
        %v1831 = vand.u32 2147483647, %v1799
        %v1832 = vand.u32 2147483647, %v1800
        %v1833 = vand.u32 2147483647, %v1801
        %v1834 = vadd.f32 %v1666, %v1802
        %v1835 = vadd.f32 %v1667, %v1803
        %v1836 = vadd.f32 %v1668, %v1804
        %v1837 = vadd.f32 %v1669, %v1805
        %v1838 = vadd.f32 %v1670, %v1806
        %v1839 = vadd.f32 %v1671, %v1807
        %v1840 = vadd.f32 %v1672, %v1808
        %v1841 = vadd.f32 %v1673, %v1809
        %v1842 = vadd.f32 %v1674, %v1810
        %v1843 = vadd.f32 %v1675, %v1811
        %v1844 = vadd.f32 %v1676, %v1812
        %v1845 = vadd.f32 %v1677, %v1813
        %v1846 = vadd.f32 %v1678, %v1814
        %v1847 = vadd.f32 %v1679, %v1815
        %v1848 = vadd.f32 %v1680, %v1816
        %v1849 = vadd.f32 %v1681, %v1817
        %v1850 = vadd.f32 %v1682, %v1818
        %v1851 = vadd.f32 %v1683, %v1819
        %v1852 = vadd.f32 %v1684, %v1820
        %v1853 = vadd.f32 %v1685, %v1821
        %v1854 = vadd.f32 %v1686, %v1822
        %v1855 = vadd.f32 %v1687, %v1823
        %v1856 = vadd.f32 %v1688, %v1824
        %v1857 = vadd.f32 %v1689, %v1825
        %v1858 = vadd.f32 %v1690, %v1826
        %v1859 = vadd.f32 %v1691, %v1827
        %v1860 = vadd.f32 %v1692, %v1828
        %v1861 = vadd.f32 %v1693, %v1829
        %v1862 = vadd.f32 %v1694, %v1830
        %v1863 = vadd.f32 %v1695, %v1831
        %v1864 = vadd.f32 %v1696, %v1832
        %v1865 = vadd.f32 %v1697, %v1833
        %1866 = vset.pattern.permute.xlu0 10
        %1867 = vperm.xlu0 %1866, %v182
        %v1868 = vpop.permute.xlu0 %1867
        %1870 = vset.pattern.permute.xlu0 10
        %1871 = vperm.xlu0 %1870, %v183
        %v1872 = vpop.permute.xlu0 %1871
        %1874 = vset.pattern.permute.xlu0 10
        %1875 = vperm.xlu0 %1874, %v184
        %v1876 = vpop.permute.xlu0 %1875
        %1878 = vset.pattern.permute.xlu0 10
        %1879 = vperm.xlu0 %1878, %v185
        %v1880 = vpop.permute.xlu0 %1879
        %1882 = vset.pattern.permute.xlu0 10
        %1883 = vperm.xlu0 %1882, %v186
        %v1884 = vpop.permute.xlu0 %1883
        %1886 = vset.pattern.permute.xlu0 10
        %1887 = vperm.xlu0 %1886, %v187
        %v1888 = vpop.permute.xlu0 %1887
        %1890 = vset.pattern.permute.xlu0 10
        %1891 = vperm.xlu0 %1890, %v188
        %v1892 = vpop.permute.xlu0 %1891
        %1894 = vset.pattern.permute.xlu0 10
        %1895 = vperm.xlu0 %1894, %v189
        %v1896 = vpop.permute.xlu0 %1895
        %1898 = vset.pattern.permute.xlu0 10
        %1899 = vperm.xlu0 %1898, %v190
        %v1900 = vpop.permute.xlu0 %1899
        %1902 = vset.pattern.permute.xlu0 10
        %1903 = vperm.xlu0 %1902, %v191
        %v1904 = vpop.permute.xlu0 %1903
        %1906 = vset.pattern.permute.xlu0 10
        %1907 = vperm.xlu0 %1906, %v192
        %v1908 = vpop.permute.xlu0 %1907
        %1910 = vset.pattern.permute.xlu0 10
        %1911 = vperm.xlu0 %1910, %v193
        %v1912 = vpop.permute.xlu0 %1911
        %1914 = vset.pattern.permute.xlu0 10
        %1915 = vperm.xlu0 %1914, %v194
        %v1916 = vpop.permute.xlu0 %1915
        %1918 = vset.pattern.permute.xlu0 10
        %1919 = vperm.xlu0 %1918, %v195
        %v1920 = vpop.permute.xlu0 %1919
        %1922 = vset.pattern.permute.xlu0 10
        %1923 = vperm.xlu0 %1922, %v196
        %v1924 = vpop.permute.xlu0 %1923
        %1926 = vset.pattern.permute.xlu0 10
        %1927 = vperm.xlu0 %1926, %v197
        %v1928 = vpop.permute.xlu0 %1927
        %v1930 = vlaneseq
        %v1931 = vshrl.u32 %v1930, 7
        %v1932 = vsub.s32 2, %v1931
        %v1933 = vrot.slane %v200, %v1932
        %v1934 = vlaneseq
        %v1935 = vshrl.u32 %v1934, 7
        %v1936 = vsub.s32 2, %v1935
        %v1937 = vrot.slane %v201, %v1936
        %v1938 = vsub.f32 %v1868, %v1933
        %v1939 = vsub.f32 %v1868, %v1937
        %v1940 = vsub.f32 %v1872, %v1933
        %v1941 = vsub.f32 %v1872, %v1937
        %v1942 = vsub.f32 %v1876, %v1933
        %v1943 = vsub.f32 %v1876, %v1937
        %v1944 = vsub.f32 %v1880, %v1933
        %v1945 = vsub.f32 %v1880, %v1937
        %v1946 = vsub.f32 %v1884, %v1933
        %v1947 = vsub.f32 %v1884, %v1937
        %v1948 = vsub.f32 %v1888, %v1933
        %v1949 = vsub.f32 %v1888, %v1937
        %v1950 = vsub.f32 %v1892, %v1933
        %v1951 = vsub.f32 %v1892, %v1937
        %v1952 = vsub.f32 %v1896, %v1933
        %v1953 = vsub.f32 %v1896, %v1937
        %v1954 = vsub.f32 %v1900, %v1933
        %v1955 = vsub.f32 %v1900, %v1937
        %v1956 = vsub.f32 %v1904, %v1933
        %v1957 = vsub.f32 %v1904, %v1937
        %v1958 = vsub.f32 %v1908, %v1933
        %v1959 = vsub.f32 %v1908, %v1937
        %v1960 = vsub.f32 %v1912, %v1933
        %v1961 = vsub.f32 %v1912, %v1937
        %v1962 = vsub.f32 %v1916, %v1933
        %v1963 = vsub.f32 %v1916, %v1937
        %v1964 = vsub.f32 %v1920, %v1933
        %v1965 = vsub.f32 %v1920, %v1937
        %v1966 = vsub.f32 %v1924, %v1933
        %v1967 = vsub.f32 %v1924, %v1937
        %v1968 = vsub.f32 %v1928, %v1933
        %v1969 = vsub.f32 %v1928, %v1937
        %v1970 = vand.u32 2147483647, %v1938
        %v1971 = vand.u32 2147483647, %v1939
        %v1972 = vand.u32 2147483647, %v1940
        %v1973 = vand.u32 2147483647, %v1941
        %v1974 = vand.u32 2147483647, %v1942
        %v1975 = vand.u32 2147483647, %v1943
        %v1976 = vand.u32 2147483647, %v1944
        %v1977 = vand.u32 2147483647, %v1945
        %v1978 = vand.u32 2147483647, %v1946
        %v1979 = vand.u32 2147483647, %v1947
        %v1980 = vand.u32 2147483647, %v1948
        %v1981 = vand.u32 2147483647, %v1949
        %v1982 = vand.u32 2147483647, %v1950
        %v1983 = vand.u32 2147483647, %v1951
        %v1984 = vand.u32 2147483647, %v1952
        %v1985 = vand.u32 2147483647, %v1953
        %v1986 = vand.u32 2147483647, %v1954
        %v1987 = vand.u32 2147483647, %v1955
        %v1988 = vand.u32 2147483647, %v1956
        %v1989 = vand.u32 2147483647, %v1957
        %v1990 = vand.u32 2147483647, %v1958
        %v1991 = vand.u32 2147483647, %v1959
        %v1992 = vand.u32 2147483647, %v1960
        %v1993 = vand.u32 2147483647, %v1961
        %v1994 = vand.u32 2147483647, %v1962
        %v1995 = vand.u32 2147483647, %v1963
        %v1996 = vand.u32 2147483647, %v1964
        %v1997 = vand.u32 2147483647, %v1965
        %v1998 = vand.u32 2147483647, %v1966
        %v1999 = vand.u32 2147483647, %v1967
        %v2000 = vand.u32 2147483647, %v1968
        %v2001 = vand.u32 2147483647, %v1969
        %v2002 = vadd.f32 %v1834, %v1970
        %v2003 = vadd.f32 %v1835, %v1971
        %v2004 = vadd.f32 %v1836, %v1972
        %v2005 = vadd.f32 %v1837, %v1973
        %v2006 = vadd.f32 %v1838, %v1974
        %v2007 = vadd.f32 %v1839, %v1975
        %v2008 = vadd.f32 %v1840, %v1976
        %v2009 = vadd.f32 %v1841, %v1977
        %v2010 = vadd.f32 %v1842, %v1978
        %v2011 = vadd.f32 %v1843, %v1979
        %v2012 = vadd.f32 %v1844, %v1980
        %v2013 = vadd.f32 %v1845, %v1981
        %v2014 = vadd.f32 %v1846, %v1982
        %v2015 = vadd.f32 %v1847, %v1983
        %v2016 = vadd.f32 %v1848, %v1984
        %v2017 = vadd.f32 %v1849, %v1985
        %v2018 = vadd.f32 %v1850, %v1986
        %v2019 = vadd.f32 %v1851, %v1987
        %v2020 = vadd.f32 %v1852, %v1988
        %v2021 = vadd.f32 %v1853, %v1989
        %v2022 = vadd.f32 %v1854, %v1990
        %v2023 = vadd.f32 %v1855, %v1991
        %v2024 = vadd.f32 %v1856, %v1992
        %v2025 = vadd.f32 %v1857, %v1993
        %v2026 = vadd.f32 %v1858, %v1994
        %v2027 = vadd.f32 %v1859, %v1995
        %v2028 = vadd.f32 %v1860, %v1996
        %v2029 = vadd.f32 %v1861, %v1997
        %v2030 = vadd.f32 %v1862, %v1998
        %v2031 = vadd.f32 %v1863, %v1999
        %v2032 = vadd.f32 %v1864, %v2000
        %v2033 = vadd.f32 %v1865, %v2001
        %2034 = vset.pattern.permute.xlu0 11
        %2035 = vperm.xlu0 %2034, %v182
        %v2036 = vpop.permute.xlu0 %2035
        %2038 = vset.pattern.permute.xlu0 11
        %2039 = vperm.xlu0 %2038, %v183
        %v2040 = vpop.permute.xlu0 %2039
        %2042 = vset.pattern.permute.xlu0 11
        %2043 = vperm.xlu0 %2042, %v184
        %v2044 = vpop.permute.xlu0 %2043
        %2046 = vset.pattern.permute.xlu0 11
        %2047 = vperm.xlu0 %2046, %v185
        %v2048 = vpop.permute.xlu0 %2047
        %2050 = vset.pattern.permute.xlu0 11
        %2051 = vperm.xlu0 %2050, %v186
        %v2052 = vpop.permute.xlu0 %2051
        %2054 = vset.pattern.permute.xlu0 11
        %2055 = vperm.xlu0 %2054, %v187
        %v2056 = vpop.permute.xlu0 %2055
        %2058 = vset.pattern.permute.xlu0 11
        %2059 = vperm.xlu0 %2058, %v188
        %v2060 = vpop.permute.xlu0 %2059
        %2062 = vset.pattern.permute.xlu0 11
        %2063 = vperm.xlu0 %2062, %v189
        %v2064 = vpop.permute.xlu0 %2063
        %2066 = vset.pattern.permute.xlu0 11
        %2067 = vperm.xlu0 %2066, %v190
        %v2068 = vpop.permute.xlu0 %2067
        %2070 = vset.pattern.permute.xlu0 11
        %2071 = vperm.xlu0 %2070, %v191
        %v2072 = vpop.permute.xlu0 %2071
        %2074 = vset.pattern.permute.xlu0 11
        %2075 = vperm.xlu0 %2074, %v192
        %v2076 = vpop.permute.xlu0 %2075
        %2078 = vset.pattern.permute.xlu0 11
        %2079 = vperm.xlu0 %2078, %v193
        %v2080 = vpop.permute.xlu0 %2079
        %2082 = vset.pattern.permute.xlu0 11
        %2083 = vperm.xlu0 %2082, %v194
        %v2084 = vpop.permute.xlu0 %2083
        %2086 = vset.pattern.permute.xlu0 11
        %2087 = vperm.xlu0 %2086, %v195
        %v2088 = vpop.permute.xlu0 %2087
        %2090 = vset.pattern.permute.xlu0 11
        %2091 = vperm.xlu0 %2090, %v196
        %v2092 = vpop.permute.xlu0 %2091
        %2094 = vset.pattern.permute.xlu0 11
        %2095 = vperm.xlu0 %2094, %v197
        %v2096 = vpop.permute.xlu0 %2095
        %v2098 = vlaneseq
        %v2099 = vshrl.u32 %v2098, 7
        %v2100 = vsub.s32 3, %v2099
        %v2101 = vrot.slane %v200, %v2100
        %v2102 = vlaneseq
        %v2103 = vshrl.u32 %v2102, 7
        %v2104 = vsub.s32 3, %v2103
        %v2105 = vrot.slane %v201, %v2104
        %v2106 = vsub.f32 %v2036, %v2101
        %v2107 = vsub.f32 %v2036, %v2105
        %v2108 = vsub.f32 %v2040, %v2101
        %v2109 = vsub.f32 %v2040, %v2105
        %v2110 = vsub.f32 %v2044, %v2101
        %v2111 = vsub.f32 %v2044, %v2105
        %v2112 = vsub.f32 %v2048, %v2101
        %v2113 = vsub.f32 %v2048, %v2105
        %v2114 = vsub.f32 %v2052, %v2101
        %v2115 = vsub.f32 %v2052, %v2105
        %v2116 = vsub.f32 %v2056, %v2101
        %v2117 = vsub.f32 %v2056, %v2105
        %v2118 = vsub.f32 %v2060, %v2101
        %v2119 = vsub.f32 %v2060, %v2105
        %v2120 = vsub.f32 %v2064, %v2101
        %v2121 = vsub.f32 %v2064, %v2105
        %v2122 = vsub.f32 %v2068, %v2101
        %v2123 = vsub.f32 %v2068, %v2105
        %v2124 = vsub.f32 %v2072, %v2101
        %v2125 = vsub.f32 %v2072, %v2105
        %v2126 = vsub.f32 %v2076, %v2101
        %v2127 = vsub.f32 %v2076, %v2105
        %v2128 = vsub.f32 %v2080, %v2101
        %v2129 = vsub.f32 %v2080, %v2105
        %v2130 = vsub.f32 %v2084, %v2101
        %v2131 = vsub.f32 %v2084, %v2105
        %v2132 = vsub.f32 %v2088, %v2101
        %v2133 = vsub.f32 %v2088, %v2105
        %v2134 = vsub.f32 %v2092, %v2101
        %v2135 = vsub.f32 %v2092, %v2105
        %v2136 = vsub.f32 %v2096, %v2101
        %v2137 = vsub.f32 %v2096, %v2105
        %v2138 = vand.u32 2147483647, %v2106
        %v2139 = vand.u32 2147483647, %v2107
        %v2140 = vand.u32 2147483647, %v2108
        %v2141 = vand.u32 2147483647, %v2109
        %v2142 = vand.u32 2147483647, %v2110
        %v2143 = vand.u32 2147483647, %v2111
        %v2144 = vand.u32 2147483647, %v2112
        %v2145 = vand.u32 2147483647, %v2113
        %v2146 = vand.u32 2147483647, %v2114
        %v2147 = vand.u32 2147483647, %v2115
        %v2148 = vand.u32 2147483647, %v2116
        %v2149 = vand.u32 2147483647, %v2117
        %v2150 = vand.u32 2147483647, %v2118
        %v2151 = vand.u32 2147483647, %v2119
        %v2152 = vand.u32 2147483647, %v2120
        %v2153 = vand.u32 2147483647, %v2121
        %v2154 = vand.u32 2147483647, %v2122
        %v2155 = vand.u32 2147483647, %v2123
        %v2156 = vand.u32 2147483647, %v2124
        %v2157 = vand.u32 2147483647, %v2125
        %v2158 = vand.u32 2147483647, %v2126
        %v2159 = vand.u32 2147483647, %v2127
        %v2160 = vand.u32 2147483647, %v2128
        %v2161 = vand.u32 2147483647, %v2129
        %v2162 = vand.u32 2147483647, %v2130
        %v2163 = vand.u32 2147483647, %v2131
        %v2164 = vand.u32 2147483647, %v2132
        %v2165 = vand.u32 2147483647, %v2133
        %v2166 = vand.u32 2147483647, %v2134
        %v2167 = vand.u32 2147483647, %v2135
        %v2168 = vand.u32 2147483647, %v2136
        %v2169 = vand.u32 2147483647, %v2137
        %v2170 = vadd.f32 %v2002, %v2138
        %v2171 = vadd.f32 %v2003, %v2139
        %v2172 = vadd.f32 %v2004, %v2140
        %v2173 = vadd.f32 %v2005, %v2141
        %v2174 = vadd.f32 %v2006, %v2142
        %v2175 = vadd.f32 %v2007, %v2143
        %v2176 = vadd.f32 %v2008, %v2144
        %v2177 = vadd.f32 %v2009, %v2145
        %v2178 = vadd.f32 %v2010, %v2146
        %v2179 = vadd.f32 %v2011, %v2147
        %v2180 = vadd.f32 %v2012, %v2148
        %v2181 = vadd.f32 %v2013, %v2149
        %v2182 = vadd.f32 %v2014, %v2150
        %v2183 = vadd.f32 %v2015, %v2151
        %v2184 = vadd.f32 %v2016, %v2152
        %v2185 = vadd.f32 %v2017, %v2153
        %v2186 = vadd.f32 %v2018, %v2154
        %v2187 = vadd.f32 %v2019, %v2155
        %v2188 = vadd.f32 %v2020, %v2156
        %v2189 = vadd.f32 %v2021, %v2157
        %v2190 = vadd.f32 %v2022, %v2158
        %v2191 = vadd.f32 %v2023, %v2159
        %v2192 = vadd.f32 %v2024, %v2160
        %v2193 = vadd.f32 %v2025, %v2161
        %v2194 = vadd.f32 %v2026, %v2162
        %v2195 = vadd.f32 %v2027, %v2163
        %v2196 = vadd.f32 %v2028, %v2164
        %v2197 = vadd.f32 %v2029, %v2165
        %v2198 = vadd.f32 %v2030, %v2166
        %v2199 = vadd.f32 %v2031, %v2167
        %v2200 = vadd.f32 %v2032, %v2168
        %v2201 = vadd.f32 %v2033, %v2169
        %2202 = vset.pattern.permute.xlu0 12
        %2203 = vperm.xlu0 %2202, %v182
        %v2204 = vpop.permute.xlu0 %2203
        %2206 = vset.pattern.permute.xlu0 12
        %2207 = vperm.xlu0 %2206, %v183
        %v2208 = vpop.permute.xlu0 %2207
        %2210 = vset.pattern.permute.xlu0 12
        %2211 = vperm.xlu0 %2210, %v184
        %v2212 = vpop.permute.xlu0 %2211
        %2214 = vset.pattern.permute.xlu0 12
        %2215 = vperm.xlu0 %2214, %v185
        %v2216 = vpop.permute.xlu0 %2215
        %2218 = vset.pattern.permute.xlu0 12
        %2219 = vperm.xlu0 %2218, %v186
        %v2220 = vpop.permute.xlu0 %2219
        %2222 = vset.pattern.permute.xlu0 12
        %2223 = vperm.xlu0 %2222, %v187
        %v2224 = vpop.permute.xlu0 %2223
        %2226 = vset.pattern.permute.xlu0 12
        %2227 = vperm.xlu0 %2226, %v188
        %v2228 = vpop.permute.xlu0 %2227
        %2230 = vset.pattern.permute.xlu0 12
        %2231 = vperm.xlu0 %2230, %v189
        %v2232 = vpop.permute.xlu0 %2231
        %2234 = vset.pattern.permute.xlu0 12
        %2235 = vperm.xlu0 %2234, %v190
        %v2236 = vpop.permute.xlu0 %2235
        %2238 = vset.pattern.permute.xlu0 12
        %2239 = vperm.xlu0 %2238, %v191
        %v2240 = vpop.permute.xlu0 %2239
        %2242 = vset.pattern.permute.xlu0 12
        %2243 = vperm.xlu0 %2242, %v192
        %v2244 = vpop.permute.xlu0 %2243
        %2246 = vset.pattern.permute.xlu0 12
        %2247 = vperm.xlu0 %2246, %v193
        %v2248 = vpop.permute.xlu0 %2247
        %2250 = vset.pattern.permute.xlu0 12
        %2251 = vperm.xlu0 %2250, %v194
        %v2252 = vpop.permute.xlu0 %2251
        %2254 = vset.pattern.permute.xlu0 12
        %2255 = vperm.xlu0 %2254, %v195
        %v2256 = vpop.permute.xlu0 %2255
        %2258 = vset.pattern.permute.xlu0 12
        %2259 = vperm.xlu0 %2258, %v196
        %v2260 = vpop.permute.xlu0 %2259
        %2262 = vset.pattern.permute.xlu0 12
        %2263 = vperm.xlu0 %2262, %v197
        %v2264 = vpop.permute.xlu0 %2263
        %v2266 = vlaneseq
        %v2267 = vshrl.u32 %v2266, 7
        %v2268 = vsub.s32 4, %v2267
        %v2269 = vrot.slane %v200, %v2268
        %v2270 = vlaneseq
        %v2271 = vshrl.u32 %v2270, 7
        %v2272 = vsub.s32 4, %v2271
        %v2273 = vrot.slane %v201, %v2272
        %v2274 = vsub.f32 %v2204, %v2269
        %v2275 = vsub.f32 %v2204, %v2273
        %v2276 = vsub.f32 %v2208, %v2269
        %v2277 = vsub.f32 %v2208, %v2273
        %v2278 = vsub.f32 %v2212, %v2269
        %v2279 = vsub.f32 %v2212, %v2273
        %v2280 = vsub.f32 %v2216, %v2269
        %v2281 = vsub.f32 %v2216, %v2273
        %v2282 = vsub.f32 %v2220, %v2269
        %v2283 = vsub.f32 %v2220, %v2273
        %v2284 = vsub.f32 %v2224, %v2269
        %v2285 = vsub.f32 %v2224, %v2273
        %v2286 = vsub.f32 %v2228, %v2269
        %v2287 = vsub.f32 %v2228, %v2273
        %v2288 = vsub.f32 %v2232, %v2269
        %v2289 = vsub.f32 %v2232, %v2273
        %v2290 = vsub.f32 %v2236, %v2269
        %v2291 = vsub.f32 %v2236, %v2273
        %v2292 = vsub.f32 %v2240, %v2269
        %v2293 = vsub.f32 %v2240, %v2273
        %v2294 = vsub.f32 %v2244, %v2269
        %v2295 = vsub.f32 %v2244, %v2273
        %v2296 = vsub.f32 %v2248, %v2269
        %v2297 = vsub.f32 %v2248, %v2273
        %v2298 = vsub.f32 %v2252, %v2269
        %v2299 = vsub.f32 %v2252, %v2273
        %v2300 = vsub.f32 %v2256, %v2269
        %v2301 = vsub.f32 %v2256, %v2273
        %v2302 = vsub.f32 %v2260, %v2269
        %v2303 = vsub.f32 %v2260, %v2273
        %v2304 = vsub.f32 %v2264, %v2269
        %v2305 = vsub.f32 %v2264, %v2273
        %v2306 = vand.u32 2147483647, %v2274
        %v2307 = vand.u32 2147483647, %v2275
        %v2308 = vand.u32 2147483647, %v2276
        %v2309 = vand.u32 2147483647, %v2277
        %v2310 = vand.u32 2147483647, %v2278
        %v2311 = vand.u32 2147483647, %v2279
        %v2312 = vand.u32 2147483647, %v2280
        %v2313 = vand.u32 2147483647, %v2281
        %v2314 = vand.u32 2147483647, %v2282
        %v2315 = vand.u32 2147483647, %v2283
        %v2316 = vand.u32 2147483647, %v2284
        %v2317 = vand.u32 2147483647, %v2285
        %v2318 = vand.u32 2147483647, %v2286
        %v2319 = vand.u32 2147483647, %v2287
        %v2320 = vand.u32 2147483647, %v2288
        %v2321 = vand.u32 2147483647, %v2289
        %v2322 = vand.u32 2147483647, %v2290
        %v2323 = vand.u32 2147483647, %v2291
        %v2324 = vand.u32 2147483647, %v2292
        %v2325 = vand.u32 2147483647, %v2293
        %v2326 = vand.u32 2147483647, %v2294
        %v2327 = vand.u32 2147483647, %v2295
        %v2328 = vand.u32 2147483647, %v2296
        %v2329 = vand.u32 2147483647, %v2297
        %v2330 = vand.u32 2147483647, %v2298
        %v2331 = vand.u32 2147483647, %v2299
        %v2332 = vand.u32 2147483647, %v2300
        %v2333 = vand.u32 2147483647, %v2301
        %v2334 = vand.u32 2147483647, %v2302
        %v2335 = vand.u32 2147483647, %v2303
        %v2336 = vand.u32 2147483647, %v2304
        %v2337 = vand.u32 2147483647, %v2305
        %v2338 = vadd.f32 %v2170, %v2306
        %v2339 = vadd.f32 %v2171, %v2307
        %v2340 = vadd.f32 %v2172, %v2308
        %v2341 = vadd.f32 %v2173, %v2309
        %v2342 = vadd.f32 %v2174, %v2310
        %v2343 = vadd.f32 %v2175, %v2311
        %v2344 = vadd.f32 %v2176, %v2312
        %v2345 = vadd.f32 %v2177, %v2313
        %v2346 = vadd.f32 %v2178, %v2314
        %v2347 = vadd.f32 %v2179, %v2315
        %v2348 = vadd.f32 %v2180, %v2316
        %v2349 = vadd.f32 %v2181, %v2317
        %v2350 = vadd.f32 %v2182, %v2318
        %v2351 = vadd.f32 %v2183, %v2319
        %v2352 = vadd.f32 %v2184, %v2320
        %v2353 = vadd.f32 %v2185, %v2321
        %v2354 = vadd.f32 %v2186, %v2322
        %v2355 = vadd.f32 %v2187, %v2323
        %v2356 = vadd.f32 %v2188, %v2324
        %v2357 = vadd.f32 %v2189, %v2325
        %v2358 = vadd.f32 %v2190, %v2326
        %v2359 = vadd.f32 %v2191, %v2327
        %v2360 = vadd.f32 %v2192, %v2328
        %v2361 = vadd.f32 %v2193, %v2329
        %v2362 = vadd.f32 %v2194, %v2330
        %v2363 = vadd.f32 %v2195, %v2331
        %v2364 = vadd.f32 %v2196, %v2332
        %v2365 = vadd.f32 %v2197, %v2333
        %v2366 = vadd.f32 %v2198, %v2334
        %v2367 = vadd.f32 %v2199, %v2335
        %v2368 = vadd.f32 %v2200, %v2336
        %v2369 = vadd.f32 %v2201, %v2337
        %2370 = vset.pattern.permute.xlu0 13
        %2371 = vperm.xlu0 %2370, %v182
        %v2372 = vpop.permute.xlu0 %2371
        %2374 = vset.pattern.permute.xlu0 13
        %2375 = vperm.xlu0 %2374, %v183
        %v2376 = vpop.permute.xlu0 %2375
        %2378 = vset.pattern.permute.xlu0 13
        %2379 = vperm.xlu0 %2378, %v184
        %v2380 = vpop.permute.xlu0 %2379
        %2382 = vset.pattern.permute.xlu0 13
        %2383 = vperm.xlu0 %2382, %v185
        %v2384 = vpop.permute.xlu0 %2383
        %2386 = vset.pattern.permute.xlu0 13
        %2387 = vperm.xlu0 %2386, %v186
        %v2388 = vpop.permute.xlu0 %2387
        %2390 = vset.pattern.permute.xlu0 13
        %2391 = vperm.xlu0 %2390, %v187
        %v2392 = vpop.permute.xlu0 %2391
        %2394 = vset.pattern.permute.xlu0 13
        %2395 = vperm.xlu0 %2394, %v188
        %v2396 = vpop.permute.xlu0 %2395
        %2398 = vset.pattern.permute.xlu0 13
        %2399 = vperm.xlu0 %2398, %v189
        %v2400 = vpop.permute.xlu0 %2399
        %2402 = vset.pattern.permute.xlu0 13
        %2403 = vperm.xlu0 %2402, %v190
        %v2404 = vpop.permute.xlu0 %2403
        %2406 = vset.pattern.permute.xlu0 13
        %2407 = vperm.xlu0 %2406, %v191
        %v2408 = vpop.permute.xlu0 %2407
        %2410 = vset.pattern.permute.xlu0 13
        %2411 = vperm.xlu0 %2410, %v192
        %v2412 = vpop.permute.xlu0 %2411
        %2414 = vset.pattern.permute.xlu0 13
        %2415 = vperm.xlu0 %2414, %v193
        %v2416 = vpop.permute.xlu0 %2415
        %2418 = vset.pattern.permute.xlu0 13
        %2419 = vperm.xlu0 %2418, %v194
        %v2420 = vpop.permute.xlu0 %2419
        %2422 = vset.pattern.permute.xlu0 13
        %2423 = vperm.xlu0 %2422, %v195
        %v2424 = vpop.permute.xlu0 %2423
        %2426 = vset.pattern.permute.xlu0 13
        %2427 = vperm.xlu0 %2426, %v196
        %v2428 = vpop.permute.xlu0 %2427
        %2430 = vset.pattern.permute.xlu0 13
        %2431 = vperm.xlu0 %2430, %v197
        %v2432 = vpop.permute.xlu0 %2431
        %v2434 = vlaneseq
        %v2435 = vshrl.u32 %v2434, 7
        %v2436 = vsub.s32 5, %v2435
        %v2437 = vrot.slane %v200, %v2436
        %v2438 = vlaneseq
        %v2439 = vshrl.u32 %v2438, 7
        %v2440 = vsub.s32 5, %v2439
        %v2441 = vrot.slane %v201, %v2440
        %v2442 = vsub.f32 %v2372, %v2437
        %v2443 = vsub.f32 %v2372, %v2441
        %v2444 = vsub.f32 %v2376, %v2437
        %v2445 = vsub.f32 %v2376, %v2441
        %v2446 = vsub.f32 %v2380, %v2437
        %v2447 = vsub.f32 %v2380, %v2441
        %v2448 = vsub.f32 %v2384, %v2437
        %v2449 = vsub.f32 %v2384, %v2441
        %v2450 = vsub.f32 %v2388, %v2437
        %v2451 = vsub.f32 %v2388, %v2441
        %v2452 = vsub.f32 %v2392, %v2437
        %v2453 = vsub.f32 %v2392, %v2441
        %v2454 = vsub.f32 %v2396, %v2437
        %v2455 = vsub.f32 %v2396, %v2441
        %v2456 = vsub.f32 %v2400, %v2437
        %v2457 = vsub.f32 %v2400, %v2441
        %v2458 = vsub.f32 %v2404, %v2437
        %v2459 = vsub.f32 %v2404, %v2441
        %v2460 = vsub.f32 %v2408, %v2437
        %v2461 = vsub.f32 %v2408, %v2441
        %v2462 = vsub.f32 %v2412, %v2437
        %v2463 = vsub.f32 %v2412, %v2441
        %v2464 = vsub.f32 %v2416, %v2437
        %v2465 = vsub.f32 %v2416, %v2441
        %v2466 = vsub.f32 %v2420, %v2437
        %v2467 = vsub.f32 %v2420, %v2441
        %v2468 = vsub.f32 %v2424, %v2437
        %v2469 = vsub.f32 %v2424, %v2441
        %v2470 = vsub.f32 %v2428, %v2437
        %v2471 = vsub.f32 %v2428, %v2441
        %v2472 = vsub.f32 %v2432, %v2437
        %v2473 = vsub.f32 %v2432, %v2441
        %v2474 = vand.u32 2147483647, %v2442
        %v2475 = vand.u32 2147483647, %v2443
        %v2476 = vand.u32 2147483647, %v2444
        %v2477 = vand.u32 2147483647, %v2445
        %v2478 = vand.u32 2147483647, %v2446
        %v2479 = vand.u32 2147483647, %v2447
        %v2480 = vand.u32 2147483647, %v2448
        %v2481 = vand.u32 2147483647, %v2449
        %v2482 = vand.u32 2147483647, %v2450
        %v2483 = vand.u32 2147483647, %v2451
        %v2484 = vand.u32 2147483647, %v2452
        %v2485 = vand.u32 2147483647, %v2453
        %v2486 = vand.u32 2147483647, %v2454
        %v2487 = vand.u32 2147483647, %v2455
        %v2488 = vand.u32 2147483647, %v2456
        %v2489 = vand.u32 2147483647, %v2457
        %v2490 = vand.u32 2147483647, %v2458
        %v2491 = vand.u32 2147483647, %v2459
        %v2492 = vand.u32 2147483647, %v2460
        %v2493 = vand.u32 2147483647, %v2461
        %v2494 = vand.u32 2147483647, %v2462
        %v2495 = vand.u32 2147483647, %v2463
        %v2496 = vand.u32 2147483647, %v2464
        %v2497 = vand.u32 2147483647, %v2465
        %v2498 = vand.u32 2147483647, %v2466
        %v2499 = vand.u32 2147483647, %v2467
        %v2500 = vand.u32 2147483647, %v2468
        %v2501 = vand.u32 2147483647, %v2469
        %v2502 = vand.u32 2147483647, %v2470
        %v2503 = vand.u32 2147483647, %v2471
        %v2504 = vand.u32 2147483647, %v2472
        %v2505 = vand.u32 2147483647, %v2473
        %v2506 = vadd.f32 %v2338, %v2474
        %v2507 = vadd.f32 %v2339, %v2475
        %v2508 = vadd.f32 %v2340, %v2476
        %v2509 = vadd.f32 %v2341, %v2477
        %v2510 = vadd.f32 %v2342, %v2478
        %v2511 = vadd.f32 %v2343, %v2479
        %v2512 = vadd.f32 %v2344, %v2480
        %v2513 = vadd.f32 %v2345, %v2481
        %v2514 = vadd.f32 %v2346, %v2482
        %v2515 = vadd.f32 %v2347, %v2483
        %v2516 = vadd.f32 %v2348, %v2484
        %v2517 = vadd.f32 %v2349, %v2485
        %v2518 = vadd.f32 %v2350, %v2486
        %v2519 = vadd.f32 %v2351, %v2487
        %v2520 = vadd.f32 %v2352, %v2488
        %v2521 = vadd.f32 %v2353, %v2489
        %v2522 = vadd.f32 %v2354, %v2490
        %v2523 = vadd.f32 %v2355, %v2491
        %v2524 = vadd.f32 %v2356, %v2492
        %v2525 = vadd.f32 %v2357, %v2493
        %v2526 = vadd.f32 %v2358, %v2494
        %v2527 = vadd.f32 %v2359, %v2495
        %v2528 = vadd.f32 %v2360, %v2496
        %v2529 = vadd.f32 %v2361, %v2497
        %v2530 = vadd.f32 %v2362, %v2498
        %v2531 = vadd.f32 %v2363, %v2499
        %v2532 = vadd.f32 %v2364, %v2500
        %v2533 = vadd.f32 %v2365, %v2501
        %v2534 = vadd.f32 %v2366, %v2502
        %v2535 = vadd.f32 %v2367, %v2503
        %v2536 = vadd.f32 %v2368, %v2504
        %v2537 = vadd.f32 %v2369, %v2505
        %2538 = vset.pattern.permute.xlu0 14
        %2539 = vperm.xlu0 %2538, %v182
        %v2540 = vpop.permute.xlu0 %2539
        %2542 = vset.pattern.permute.xlu0 14
        %2543 = vperm.xlu0 %2542, %v183
        %v2544 = vpop.permute.xlu0 %2543
        %2546 = vset.pattern.permute.xlu0 14
        %2547 = vperm.xlu0 %2546, %v184
        %v2548 = vpop.permute.xlu0 %2547
        %2550 = vset.pattern.permute.xlu0 14
        %2551 = vperm.xlu0 %2550, %v185
        %v2552 = vpop.permute.xlu0 %2551
        %2554 = vset.pattern.permute.xlu0 14
        %2555 = vperm.xlu0 %2554, %v186
        %v2556 = vpop.permute.xlu0 %2555
        %2558 = vset.pattern.permute.xlu0 14
        %2559 = vperm.xlu0 %2558, %v187
        %v2560 = vpop.permute.xlu0 %2559
        %2562 = vset.pattern.permute.xlu0 14
        %2563 = vperm.xlu0 %2562, %v188
        %v2564 = vpop.permute.xlu0 %2563
        %2566 = vset.pattern.permute.xlu0 14
        %2567 = vperm.xlu0 %2566, %v189
        %v2568 = vpop.permute.xlu0 %2567
        %2570 = vset.pattern.permute.xlu0 14
        %2571 = vperm.xlu0 %2570, %v190
        %v2572 = vpop.permute.xlu0 %2571
        %2574 = vset.pattern.permute.xlu0 14
        %2575 = vperm.xlu0 %2574, %v191
        %v2576 = vpop.permute.xlu0 %2575
        %2578 = vset.pattern.permute.xlu0 14
        %2579 = vperm.xlu0 %2578, %v192
        %v2580 = vpop.permute.xlu0 %2579
        %2582 = vset.pattern.permute.xlu0 14
        %2583 = vperm.xlu0 %2582, %v193
        %v2584 = vpop.permute.xlu0 %2583
        %2586 = vset.pattern.permute.xlu0 14
        %2587 = vperm.xlu0 %2586, %v194
        %v2588 = vpop.permute.xlu0 %2587
        %2590 = vset.pattern.permute.xlu0 14
        %2591 = vperm.xlu0 %2590, %v195
        %v2592 = vpop.permute.xlu0 %2591
        %2594 = vset.pattern.permute.xlu0 14
        %2595 = vperm.xlu0 %2594, %v196
        %v2596 = vpop.permute.xlu0 %2595
        %2598 = vset.pattern.permute.xlu0 14
        %2599 = vperm.xlu0 %2598, %v197
        %v2600 = vpop.permute.xlu0 %2599
        %v2602 = vlaneseq
        %v2603 = vshrl.u32 %v2602, 7
        %v2604 = vsub.s32 6, %v2603
        %v2605 = vrot.slane %v200, %v2604
        %v2606 = vlaneseq
        %v2607 = vshrl.u32 %v2606, 7
        %v2608 = vsub.s32 6, %v2607
        %v2609 = vrot.slane %v201, %v2608
        %v2610 = vsub.f32 %v2540, %v2605
        %v2611 = vsub.f32 %v2540, %v2609
        %v2612 = vsub.f32 %v2544, %v2605
        %v2613 = vsub.f32 %v2544, %v2609
        %v2614 = vsub.f32 %v2548, %v2605
        %v2615 = vsub.f32 %v2548, %v2609
        %v2616 = vsub.f32 %v2552, %v2605
        %v2617 = vsub.f32 %v2552, %v2609
        %v2618 = vsub.f32 %v2556, %v2605
        %v2619 = vsub.f32 %v2556, %v2609
        %v2620 = vsub.f32 %v2560, %v2605
        %v2621 = vsub.f32 %v2560, %v2609
        %v2622 = vsub.f32 %v2564, %v2605
        %v2623 = vsub.f32 %v2564, %v2609
        %v2624 = vsub.f32 %v2568, %v2605
        %v2625 = vsub.f32 %v2568, %v2609
        %v2626 = vsub.f32 %v2572, %v2605
        %v2627 = vsub.f32 %v2572, %v2609
        %v2628 = vsub.f32 %v2576, %v2605
        %v2629 = vsub.f32 %v2576, %v2609
        %v2630 = vsub.f32 %v2580, %v2605
        %v2631 = vsub.f32 %v2580, %v2609
        %v2632 = vsub.f32 %v2584, %v2605
        %v2633 = vsub.f32 %v2584, %v2609
        %v2634 = vsub.f32 %v2588, %v2605
        %v2635 = vsub.f32 %v2588, %v2609
        %v2636 = vsub.f32 %v2592, %v2605
        %v2637 = vsub.f32 %v2592, %v2609
        %v2638 = vsub.f32 %v2596, %v2605
        %v2639 = vsub.f32 %v2596, %v2609
        %v2640 = vsub.f32 %v2600, %v2605
        %v2641 = vsub.f32 %v2600, %v2609
        %v2642 = vand.u32 2147483647, %v2610
        %v2643 = vand.u32 2147483647, %v2611
        %v2644 = vand.u32 2147483647, %v2612
        %v2645 = vand.u32 2147483647, %v2613
        %v2646 = vand.u32 2147483647, %v2614
        %v2647 = vand.u32 2147483647, %v2615
        %v2648 = vand.u32 2147483647, %v2616
        %v2649 = vand.u32 2147483647, %v2617
        %v2650 = vand.u32 2147483647, %v2618
        %v2651 = vand.u32 2147483647, %v2619
        %v2652 = vand.u32 2147483647, %v2620
        %v2653 = vand.u32 2147483647, %v2621
        %v2654 = vand.u32 2147483647, %v2622
        %v2655 = vand.u32 2147483647, %v2623
        %v2656 = vand.u32 2147483647, %v2624
        %v2657 = vand.u32 2147483647, %v2625
        %v2658 = vand.u32 2147483647, %v2626
        %v2659 = vand.u32 2147483647, %v2627
        %v2660 = vand.u32 2147483647, %v2628
        %v2661 = vand.u32 2147483647, %v2629
        %v2662 = vand.u32 2147483647, %v2630
        %v2663 = vand.u32 2147483647, %v2631
        %v2664 = vand.u32 2147483647, %v2632
        %v2665 = vand.u32 2147483647, %v2633
        %v2666 = vand.u32 2147483647, %v2634
        %v2667 = vand.u32 2147483647, %v2635
        %v2668 = vand.u32 2147483647, %v2636
        %v2669 = vand.u32 2147483647, %v2637
        %v2670 = vand.u32 2147483647, %v2638
        %v2671 = vand.u32 2147483647, %v2639
        %v2672 = vand.u32 2147483647, %v2640
        %v2673 = vand.u32 2147483647, %v2641
        %v2674 = vadd.f32 %v2506, %v2642
        %v2675 = vadd.f32 %v2507, %v2643
        %v2676 = vadd.f32 %v2508, %v2644
        %v2677 = vadd.f32 %v2509, %v2645
        %v2678 = vadd.f32 %v2510, %v2646
        %v2679 = vadd.f32 %v2511, %v2647
        %v2680 = vadd.f32 %v2512, %v2648
        %v2681 = vadd.f32 %v2513, %v2649
        %v2682 = vadd.f32 %v2514, %v2650
        %v2683 = vadd.f32 %v2515, %v2651
        %v2684 = vadd.f32 %v2516, %v2652
        %v2685 = vadd.f32 %v2517, %v2653
        %v2686 = vadd.f32 %v2518, %v2654
        %v2687 = vadd.f32 %v2519, %v2655
        %v2688 = vadd.f32 %v2520, %v2656
        %v2689 = vadd.f32 %v2521, %v2657
        %v2690 = vadd.f32 %v2522, %v2658
        %v2691 = vadd.f32 %v2523, %v2659
        %v2692 = vadd.f32 %v2524, %v2660
        %v2693 = vadd.f32 %v2525, %v2661
        %v2694 = vadd.f32 %v2526, %v2662
        %v2695 = vadd.f32 %v2527, %v2663
        %v2696 = vadd.f32 %v2528, %v2664
        %v2697 = vadd.f32 %v2529, %v2665
        %v2698 = vadd.f32 %v2530, %v2666
        %v2699 = vadd.f32 %v2531, %v2667
        %v2700 = vadd.f32 %v2532, %v2668
        %v2701 = vadd.f32 %v2533, %v2669
        %v2702 = vadd.f32 %v2534, %v2670
        %v2703 = vadd.f32 %v2535, %v2671
        %v2704 = vadd.f32 %v2536, %v2672
        %v2705 = vadd.f32 %v2537, %v2673
        %2706 = vset.pattern.permute.xlu0 15
        %2707 = vperm.xlu0 %2706, %v182
        %v2708 = vpop.permute.xlu0 %2707
        %2710 = vset.pattern.permute.xlu0 15
        %2711 = vperm.xlu0 %2710, %v183
        %v2712 = vpop.permute.xlu0 %2711
        %2714 = vset.pattern.permute.xlu0 15
        %2715 = vperm.xlu0 %2714, %v184
        %v2716 = vpop.permute.xlu0 %2715
        %2718 = vset.pattern.permute.xlu0 15
        %2719 = vperm.xlu0 %2718, %v185
        %v2720 = vpop.permute.xlu0 %2719
        %2722 = vset.pattern.permute.xlu0 15
        %2723 = vperm.xlu0 %2722, %v186
        %v2724 = vpop.permute.xlu0 %2723
        %2726 = vset.pattern.permute.xlu0 15
        %2727 = vperm.xlu0 %2726, %v187
        %v2728 = vpop.permute.xlu0 %2727
        %2730 = vset.pattern.permute.xlu0 15
        %2731 = vperm.xlu0 %2730, %v188
        %v2732 = vpop.permute.xlu0 %2731
        %2734 = vset.pattern.permute.xlu0 15
        %2735 = vperm.xlu0 %2734, %v189
        %v2736 = vpop.permute.xlu0 %2735
        %2738 = vset.pattern.permute.xlu0 15
        %2739 = vperm.xlu0 %2738, %v190
        %v2740 = vpop.permute.xlu0 %2739
        %2742 = vset.pattern.permute.xlu0 15
        %2743 = vperm.xlu0 %2742, %v191
        %v2744 = vpop.permute.xlu0 %2743
        %2746 = vset.pattern.permute.xlu0 15
        %2747 = vperm.xlu0 %2746, %v192
        %v2748 = vpop.permute.xlu0 %2747
        %2750 = vset.pattern.permute.xlu0 15
        %2751 = vperm.xlu0 %2750, %v193
        %v2752 = vpop.permute.xlu0 %2751
        %2754 = vset.pattern.permute.xlu0 15
        %2755 = vperm.xlu0 %2754, %v194
        %v2756 = vpop.permute.xlu0 %2755
        %2758 = vset.pattern.permute.xlu0 15
        %2759 = vperm.xlu0 %2758, %v195
        %v2760 = vpop.permute.xlu0 %2759
        %2762 = vset.pattern.permute.xlu0 15
        %2763 = vperm.xlu0 %2762, %v196
        %v2764 = vpop.permute.xlu0 %2763
        %2766 = vset.pattern.permute.xlu0 15
        %2767 = vperm.xlu0 %2766, %v197
        %v2768 = vpop.permute.xlu0 %2767
        %v2770 = vlaneseq
        %v2771 = vshrl.u32 %v2770, 7
        %v2772 = vsub.s32 7, %v2771
        %v2773 = vrot.slane %v200, %v2772
        %v2774 = vlaneseq
        %v2775 = vshrl.u32 %v2774, 7
        %v2776 = vsub.s32 7, %v2775
        %v2777 = vrot.slane %v201, %v2776
        %v2778 = vsub.f32 %v2708, %v2773
        %v2779 = vsub.f32 %v2708, %v2777
        %v2780 = vsub.f32 %v2712, %v2773
        %v2781 = vsub.f32 %v2712, %v2777
        %v2782 = vsub.f32 %v2716, %v2773
        %v2783 = vsub.f32 %v2716, %v2777
        %v2784 = vsub.f32 %v2720, %v2773
        %v2785 = vsub.f32 %v2720, %v2777
        %v2786 = vsub.f32 %v2724, %v2773
        %v2787 = vsub.f32 %v2724, %v2777
        %v2788 = vsub.f32 %v2728, %v2773
        %v2789 = vsub.f32 %v2728, %v2777
        %v2790 = vsub.f32 %v2732, %v2773
        %v2791 = vsub.f32 %v2732, %v2777
        %v2792 = vsub.f32 %v2736, %v2773
        %v2793 = vsub.f32 %v2736, %v2777
        %v2794 = vsub.f32 %v2740, %v2773
        %v2795 = vsub.f32 %v2740, %v2777
        %v2796 = vsub.f32 %v2744, %v2773
        %v2797 = vsub.f32 %v2744, %v2777
        %v2798 = vsub.f32 %v2748, %v2773
        %v2799 = vsub.f32 %v2748, %v2777
        %v2800 = vsub.f32 %v2752, %v2773
        %v2801 = vsub.f32 %v2752, %v2777
        %v2802 = vsub.f32 %v2756, %v2773
        %v2803 = vsub.f32 %v2756, %v2777
        %v2804 = vsub.f32 %v2760, %v2773
        %v2805 = vsub.f32 %v2760, %v2777
        %v2806 = vsub.f32 %v2764, %v2773
        %v2807 = vsub.f32 %v2764, %v2777
        %v2808 = vsub.f32 %v2768, %v2773
        %v2809 = vsub.f32 %v2768, %v2777
        %v2810 = vand.u32 2147483647, %v2778
        %v2811 = vand.u32 2147483647, %v2779
        %v2812 = vand.u32 2147483647, %v2780
        %v2813 = vand.u32 2147483647, %v2781
        %v2814 = vand.u32 2147483647, %v2782
        %v2815 = vand.u32 2147483647, %v2783
        %v2816 = vand.u32 2147483647, %v2784
        %v2817 = vand.u32 2147483647, %v2785
        %v2818 = vand.u32 2147483647, %v2786
        %v2819 = vand.u32 2147483647, %v2787
        %v2820 = vand.u32 2147483647, %v2788
        %v2821 = vand.u32 2147483647, %v2789
        %v2822 = vand.u32 2147483647, %v2790
        %v2823 = vand.u32 2147483647, %v2791
        %v2824 = vand.u32 2147483647, %v2792
        %v2825 = vand.u32 2147483647, %v2793
        %v2826 = vand.u32 2147483647, %v2794
        %v2827 = vand.u32 2147483647, %v2795
        %v2828 = vand.u32 2147483647, %v2796
        %v2829 = vand.u32 2147483647, %v2797
        %v2830 = vand.u32 2147483647, %v2798
        %v2831 = vand.u32 2147483647, %v2799
        %v2832 = vand.u32 2147483647, %v2800
        %v2833 = vand.u32 2147483647, %v2801
        %v2834 = vand.u32 2147483647, %v2802
        %v2835 = vand.u32 2147483647, %v2803
        %v2836 = vand.u32 2147483647, %v2804
        %v2837 = vand.u32 2147483647, %v2805
        %v2838 = vand.u32 2147483647, %v2806
        %v2839 = vand.u32 2147483647, %v2807
        %v2840 = vand.u32 2147483647, %v2808
        %v2841 = vand.u32 2147483647, %v2809
        %v2842 = vadd.f32 %v2674, %v2810
        %v2843 = vadd.f32 %v2675, %v2811
        %v2844 = vadd.f32 %v2676, %v2812
        %v2845 = vadd.f32 %v2677, %v2813
        %v2846 = vadd.f32 %v2678, %v2814
        %v2847 = vadd.f32 %v2679, %v2815
        %v2848 = vadd.f32 %v2680, %v2816
        %v2849 = vadd.f32 %v2681, %v2817
        %v2850 = vadd.f32 %v2682, %v2818
        %v2851 = vadd.f32 %v2683, %v2819
        %v2852 = vadd.f32 %v2684, %v2820
        %v2853 = vadd.f32 %v2685, %v2821
        %v2854 = vadd.f32 %v2686, %v2822
        %v2855 = vadd.f32 %v2687, %v2823
        %v2856 = vadd.f32 %v2688, %v2824
        %v2857 = vadd.f32 %v2689, %v2825
        %v2858 = vadd.f32 %v2690, %v2826
        %v2859 = vadd.f32 %v2691, %v2827
        %v2860 = vadd.f32 %v2692, %v2828
        %v2861 = vadd.f32 %v2693, %v2829
        %v2862 = vadd.f32 %v2694, %v2830
        %v2863 = vadd.f32 %v2695, %v2831
        %v2864 = vadd.f32 %v2696, %v2832
        %v2865 = vadd.f32 %v2697, %v2833
        %v2866 = vadd.f32 %v2698, %v2834
        %v2867 = vadd.f32 %v2699, %v2835
        %v2868 = vadd.f32 %v2700, %v2836
        %v2869 = vadd.f32 %v2701, %v2837
        %v2870 = vadd.f32 %v2702, %v2838
        %v2871 = vadd.f32 %v2703, %v2839
        %v2872 = vadd.f32 %v2704, %v2840
        %v2873 = vadd.f32 %v2705, %v2841
        %2874 = vst [vmem:[%s167] sm:$0xff] %v2842
        %2875 = vst [vmem:[%s167 + $0x8] sm:$0xff] %v2843
        %2876 = vst [vmem:[%s167 + $0x10] sm:$0xff] %v2844
        %2877 = vst [vmem:[%s167 + $0x18] sm:$0xff] %v2845
        %2878 = vst [vmem:[%s167 + $0x20] sm:$0xff] %v2846
        %2879 = vst [vmem:[%s167 + $0x28] sm:$0xff] %v2847
        %2880 = vst [vmem:[%s167 + $0x30] sm:$0xff] %v2848
        %2881 = vst [vmem:[%s167 + $0x38] sm:$0xff] %v2849
        %2882 = vst [vmem:[%s167 + $0x40] sm:$0xff] %v2850
        %2883 = vst [vmem:[%s167 + $0x48] sm:$0xff] %v2851
        %2884 = vst [vmem:[%s167 + $0x50] sm:$0xff] %v2852
        %2885 = vst [vmem:[%s167 + $0x58] sm:$0xff] %v2853
        %2886 = vst [vmem:[%s167 + $0x60] sm:$0xff] %v2854
        %2887 = vst [vmem:[%s167 + $0x68] sm:$0xff] %v2855
        %2888 = vst [vmem:[%s167 + $0x70] sm:$0xff] %v2856
        %2889 = vst [vmem:[%s167 + $0x78] sm:$0xff] %v2857
        %2890 = vst [vmem:[%s167 + $0x80] sm:$0xff] %v2858
        %2891 = vst [vmem:[%s167 + $0x88] sm:$0xff] %v2859
        %2892 = vst [vmem:[%s167 + $0x90] sm:$0xff] %v2860
        %2893 = vst [vmem:[%s167 + $0x98] sm:$0xff] %v2861
        %2894 = vst [vmem:[%s167 + $0xa0] sm:$0xff] %v2862
        %2895 = vst [vmem:[%s167 + $0xa8] sm:$0xff] %v2863
        %2896 = vst [vmem:[%s167 + $0xb0] sm:$0xff] %v2864
        %2897 = vst [vmem:[%s167 + $0xb8] sm:$0xff] %v2865
        %2898 = vst [vmem:[%s167 + $0xc0] sm:$0xff] %v2866
        %2899 = vst [vmem:[%s167 + $0xc8] sm:$0xff] %v2867
        %2900 = vst [vmem:[%s167 + $0xd0] sm:$0xff] %v2868
        %2901 = vst [vmem:[%s167 + $0xd8] sm:$0xff] %v2869
        %2902 = vst [vmem:[%s167 + $0xe0] sm:$0xff] %v2870
        %2903 = vst [vmem:[%s167 + $0xe8] sm:$0xff] %v2871
        %2904 = vst [vmem:[%s167 + $0xf0] sm:$0xff] %v2872
        %2905 = vst [vmem:[%s167 + $0xf8] sm:$0xff] %v2873
        %s2906 = sand.u32 %s90, 1
        %s2907 = scalar_lea.sflag [#allocation3], %s2906
        %s2908 = sand.u32 %s90, 1
        %s2909 = smul.addr %s2908, 256
        %s2910 = scalar_lea.vmem [#allocation2], %s2909
        // Predicated region
        $region29: #{tpu_custom_call.1} parent=27 // pred_check
          %p2911 = pneg %p100
        $region30: #{tpu_custom_call.1} parent=27 // pred_check_branch
          %2913 = sbr.rel (%p2911) target = $region32
        $region31: #{tpu_custom_call.1} parent=27 // pred_region
          %s2914 = smul.u32 16, %s20
          %s2915 = smul.u32 2, %s21
          %s2917 = ssub.s32 4096, 4096
          %2918 = vsyncadd %s2907, %s2917
          %s2919 = smul.addr %s2914, 2
          %s2920 = sadd.s32 %s2915, %s2919
          %s2921 = smul.addr %s2920, 128
          %s2922 = scalar_lea.hbm %s2, %s2921
          %s2923 = sshll.u32 %s2910, 4
          %s2924 = int_to_ptr.vmem [resolvable:$true] %s2923
          %2929 = dma.vmem_to_hbm [thread:$0]  %s2924, 4096, %s2922, %s2907, 256, 256, 16
        $region32: #{tpu_custom_call.1} parent=27 // pred_fallthru
          _
      $region28: #{tpu_custom_call.1} parent=5 // pred_fallthru
        _
      %p2930 = scmp.le.s32.totalorder 2, %s11
      // Predicated region
      $region33: #{tpu_custom_call.1} parent=5 // pred_check
        %p2931 = pneg %p2930
      $region34: #{tpu_custom_call.1} parent=5 // pred_check_branch
        %2933 = sbr.rel (%p2931) target = $region36
      $region35: #{tpu_custom_call.1} parent=5 // pred_region
        %s2934 = ssub.s32 %s11, 2
        // Predicated region
        $region37: #{tpu_custom_call.1} parent=35 // pred_check
          %p2935 = pneg %p106
        $region38: #{tpu_custom_call.1} parent=35 // pred_check_branch
          %2937 = sbr.rel (%p2935) target = $region40
        $region39: #{tpu_custom_call.1} parent=35 // pred_region
          %s2938 = sand.u32 %s91, 1
          %s2939 = scalar_lea.sflag [#allocation3], %s2938
          %s2940 = sand.u32 %s91, 1
          %s2941 = smul.addr %s2940, 256
          %s2942 = scalar_lea.vmem [#allocation2], %s2941
          %2943 = dma.done %s2939, 4096
        $region40: #{tpu_custom_call.1} parent=35 // pred_fallthru
          _
      $region36: #{tpu_custom_call.1} parent=5 // pred_fallthru
        _
    $region6: #{tpu_custom_call.1} parent=1 // loop_footer
      %s15 = sadd.s32 1, %s11
    $region7: #{tpu_custom_call.1} parent=1 // loop_footer_branch
      %10 = sbr.rel target = $region3
    $region8: #{tpu_custom_call.1} parent=1 // loop_exit
      _
    %2944 = vsyncpa [#allocation3], 1
    %s2945 = scalar_lea.sflag [#allocation3], 1
    %2946 = vsyncpa %s2945, 1

</llo_original>
